<compile_context>
chip_gen: v6e
topology: v6e:2x2x1
jax: 0.10.0
libtpu: 0.0.40
codegen_flags: <defaults>
</compile_context>

<pallas_src>
import math

import jax
import jax.numpy as jnp
from jax.experimental import pallas as pl
from jax.experimental.pallas import tpu as pltpu


def _attn_kernel(q_ref, k_ref, v_ref, out_ref, probs_ref=None):
    # Blocks: q (BB, Sq, Dk), k (BB, Sk, Dk), v (BB, Sk, Dv),
    #         out (BB, Sq*Dv) [lane-dense flattened], probs (BB, Sq, Sk).
    q = q_ref[...]
    k = k_ref[...]
    v = v_ref[...]

    dk = q.shape[-1]
    scale = jnp.asarray(1.0 / math.sqrt(dk), dtype=q.dtype)
    qs = q * scale  # fold 1/sqrt(D) into Q before the matmul

    # scores = Q K^T; transpose folded into the contraction, f32 accumulation.
    s = jnp.einsum("bqd,bkd->bqk", qs, k, preferred_element_type=jnp.float32)

    # Numerically-stable softmax over the key axis, in f32.
    m = jnp.max(s, axis=-1, keepdims=True)
    e = jnp.exp(s - m)
    l = jnp.sum(e, axis=-1, keepdims=True)
    # One reciprocal per query row + broadcast multiply instead of an SxS
    # divide.  approx=True would run fully on the EUP; kept exact so the fp32
    # result stays within the tight parity bound of the reference.
    p = e * pl.reciprocal(l, approx=False)

    if probs_ref is not None:
        probs_ref[...] = p.astype(probs_ref.dtype)

    o = jnp.einsum("bqk,bkd->bqd", p.astype(v.dtype), v,
                   preferred_element_type=jnp.float32)
    out_ref[...] = o.reshape(out_ref.shape).astype(out_ref.dtype)


def _pick_block_batch(bf, sq, sk, dk, dv, io_bytes, emit_probs):
    """How many flattened sequences to process per grid step.

    Sized so double-buffered pipeline blocks + f32 temporaries stay ~4 MiB
    (well under the 16/32 MiB scoped-VMEM defaults and v7x's 64 MiB physical
    VMEM), kept a multiple of 8 (sublane-aligned blocks) and small enough that
    the grid has >= 2 steps (keeps both v7x TensorCores busy).
    """
    lane = lambda n: -(-n // 128) * 128
    sub = lambda n: -(-n // 8) * 8

    per = 0
    per += 2 * sub(sq) * lane(dk) * io_bytes        # q, double-buffered
    per += 2 * sub(sk) * lane(dk) * io_bytes        # k
    per += 2 * sub(sk) * lane(dv) * io_bytes        # v
    per += 2 * lane(sq * dv) * io_bytes             # out (lane-flattened)
    if emit_probs:
        per += 2 * sub(sq) * lane(sk) * io_bytes    # probs
    per += 3 * sub(sq) * lane(sk) * 4               # f32 scores / exp temps
    per += 2 * sub(sq) * lane(dv) * 4               # f32 accumulation temps

    budget = 4 * 1024 * 1024                        # ~4 MiB per grid step
    bb = max(1, budget // per)
    if bf >= 2:
        bb = min(bb, max(1, bf // 2))               # keep >= 2 grid steps
    bb = min(bb, bf)
    bb = max(8, (bb // 8) * 8)                      # sublane-aligned
    return int(bb)


def _sdpa_pallas(q, k, v, return_probs=True):
    """Batched scaled-dot-product attention.

    q: (B_flat, Sq, Dk), k: (B_flat, Sk, Dk), v: (B_flat, Sk, Dv).
    Returns out (B_flat, Sq, Dv) and (optionally) probs (B_flat, Sq, Sk).
    """
    bf, sq, dk = q.shape
    _, sk, _ = k.shape
    dv = v.shape[-1]
    io_dtype = q.dtype

    bb = _pick_block_batch(bf, sq, sk, dk, dv,
                           jnp.dtype(io_dtype).itemsize, return_probs)
    bf_pad = pl.cdiv(bf, bb) * bb
    if bf_pad != bf:
        pad = ((0, bf_pad - bf), (0, 0), (0, 0))
        q = jnp.pad(q, pad)
        k = jnp.pad(k, pad)
        v = jnp.pad(v, pad)

    in_specs = [
        pl.BlockSpec((bb, sq, dk), lambda i: (i, 0, 0)),
        pl.BlockSpec((bb, sk, dk), lambda i: (i, 0, 0)),
        pl.BlockSpec((bb, sk, dv), lambda i: (i, 0, 0)),
    ]
    # `out` is written through a lane-dense (B, Sq*Dv) slab so the store path
    # is not a sub-128-lane masked write; the wrapper reshape back is free.
    out_specs = [pl.BlockSpec((bb, sq * dv), lambda i: (i, 0))]
    out_shape = [jax.ShapeDtypeStruct((bf_pad, sq * dv), io_dtype)]
    if return_probs:
        out_specs.append(pl.BlockSpec((bb, sq, sk), lambda i: (i, 0, 0)))
        out_shape.append(jax.ShapeDtypeStruct((bf_pad, sq, sk), io_dtype))

    outs = pl.pallas_call(
        _attn_kernel,
        out_shape=tuple(out_shape),
        grid_spec=pltpu.PrefetchScalarGridSpec(
            num_scalar_prefetch=0,
            grid=(bf_pad // bb,),
            in_specs=in_specs,
            out_specs=tuple(out_specs),
        ),
        compiler_params=pltpu.CompilerParams(
            dimension_semantics=("parallel",),
            vmem_limit_bytes=32 * 1024 * 1024,
        ),
    )(q, k, v)
    if not isinstance(outs, (tuple, list)):
        outs = (outs,)

    out = outs[0][:bf].reshape(bf, sq, dv)
    probs = outs[1][:bf] if return_probs else None
    return out, probs


def axial_attention(q, k, v, axial_dim, attn_dropout=0.0, return_probs=True):
    """JAX/Pallas port of AxialAttention.forward (eval mode).

    q, k, v: (b, h, d1, ..., dn, dim).
    Returns (out, attn_probs) matching the PyTorch module (attn_probs is None
    when return_probs=False, which also drops that HBM writeback stream).
    """
    # TODO(synk): attention_mask / head_mask (optional args) and train-mode
    # attn_dropout are not wired in; the reference forward with mask=None and
    # eval-mode dropout (p=0) is reproduced exactly.
    del attn_dropout
    ad = axial_dim + 2
    if ad >= q.ndim - 1:
        raise ValueError("axial dim does not match input shape")

    qs = jnp.moveaxis(q, ad, -2)   # shift_dim(x, ad, -2)
    ks = jnp.moveaxis(k, ad, -2)
    vs = jnp.moveaxis(v, ad, -2)
    old_shape = vs.shape

    qf = qs.reshape((-1,) + qs.shape[-2:])
    kf = ks.reshape((-1,) + ks.shape[-2:])
    vf = vs.reshape((-1,) + vs.shape[-2:])

    out, attn_probs = _sdpa_pallas(qf, kf, vf, return_probs=return_probs)

    out = out.reshape(old_shape)
    out = jnp.moveaxis(out, -2, ad)  # shift_dim(out, -2, ad)
    return out, attn_probs


def _reference(q, k, v, axial_dim):
    """Plain-JAX reference mirroring the PyTorch code, for validation."""
    ad = axial_dim + 2
    qs = jnp.moveaxis(q, ad, -2)
    ks = jnp.moveaxis(k, ad, -2)
    vs = jnp.moveaxis(v, ad, -2)
    old_shape = vs.shape
    qf = qs.reshape((-1,) + qs.shape[-2:])
    kf = ks.reshape((-1,) + ks.shape[-2:])
    vf = vs.reshape((-1,) + vs.shape[-2:])
    attn = jnp.einsum("bqd,bkd->bqk", qf, kf) / jnp.sqrt(
        jnp.float32(qf.shape[-1])
    )
    probs = jax.nn.softmax(attn.astype(jnp.float32), axis=-1)
    out = jnp.einsum("bqk,bkd->bqd", probs.astype(vf.dtype), vf)
    out = out.reshape(old_shape)
    out = jnp.moveaxis(out, -2, ad)
    return out, probs


if __name__ == "__main__":
    key = jax.random.PRNGKey(0)
    kq, kk, kv = jax.random.split(key, 3)

    # (b, h, d1, d2, dim_q); axial_dim=0 -> attention over d1 (seq len 8)
    b, h, d1, d2, dim_q = 2, 2, 8, 4, 32
    q = jax.random.normal(kq, (b, h, d1, d2, dim_q), dtype=jnp.float32)
    k = jax.random.normal(kk, (b, h, d1, d2, dim_q), dtype=jnp.float32)
    v = jax.random.normal(kv, (b, h, d1, d2, dim_q), dtype=jnp.float32)

    out, probs = axial_attention(q, k, v, axial_dim=0)
    out, probs = jax.block_until_ready((out, probs))

    ref_out, ref_probs = _reference(q, k, v, axial_dim=0)
    assert out.shape == (b, h, d1, d2, dim_q)
    assert probs.shape == (b * h * d2, d1, d1)
    assert jnp.allclose(out, ref_out, atol=2e-5, rtol=2e-5)
    assert jnp.allclose(probs, ref_probs, atol=2e-5, rtol=2e-5)

    # bf16 I/O + probs-free fast path on a different axial dim (smoke test).
    qb, kb, vb = (x.astype(jnp.bfloat16) for x in (q, k, v))
    out_b, probs_b = axial_attention(qb, kb, vb, axial_dim=1,
                                     return_probs=False)
    out_b = jax.block_until_ready(out_b)
    assert probs_b is None
    assert out_b.shape == q.shape and out_b.dtype == jnp.bfloat16
    assert bool(jnp.all(jnp.isfinite(out_b.astype(jnp.float32))))

    print("KERNEL_OK")
</pallas_src>

<mosaic_0001>
module attributes {stable_mosaic.version = 11 : i64} {
  func.func @_attn_kernel(%arg0: i32, %arg1: memref<8x8x32xf32, #tpu.memory_space<vmem>>, %arg2: memref<8x8x32xf32, #tpu.memory_space<vmem>>, %arg3: memref<8x8x32xf32, #tpu.memory_space<vmem>>, %arg4: memref<8x256xf32, #tpu.memory_space<vmem>>, %arg5: memref<8x8x8xf32, #tpu.memory_space<vmem>>) attributes {dimension_semantics = [#tpu.dimension_semantics<parallel>], iteration_bounds = array<i64: 2>, scalar_prefetch = 0 : i64, scratch_operands = 0 : i64, tpu.core_type = #tpu.core_type<tc>, window_params = [{transform_indices = @transform_0, window_bounds = array<i64: 8, 8, 32>}, {transform_indices = @transform_1, window_bounds = array<i64: 8, 8, 32>}, {transform_indices = @transform_2, window_bounds = array<i64: 8, 8, 32>}, {transform_indices = @transform_3, window_bounds = array<i64: 8, 256>}, {transform_indices = @transform_4, window_bounds = array<i64: 8, 8, 8>}]} {
    %c0 = arith.constant 0 : index
    %c0_0 = arith.constant 0 : index
    %c0_1 = arith.constant 0 : index
    %0 = vector.load %arg1[%c0, %c0_0, %c0_1] : memref<8x8x32xf32, #tpu.memory_space<vmem>>, vector<8x8x32xf32>
    %c0_2 = arith.constant 0 : index
    %c0_3 = arith.constant 0 : index
    %c0_4 = arith.constant 0 : index
    %1 = vector.load %arg2[%c0_2, %c0_3, %c0_4] : memref<8x8x32xf32, #tpu.memory_space<vmem>>, vector<8x8x32xf32>
    %c0_5 = arith.constant 0 : index
    %c0_6 = arith.constant 0 : index
    %c0_7 = arith.constant 0 : index
    %2 = vector.load %arg3[%c0_5, %c0_6, %c0_7] : memref<8x8x32xf32, #tpu.memory_space<vmem>>, vector<8x8x32xf32>
    %cst = arith.constant 0.176776692 : f32
    %3 = vector.broadcast %cst : f32 to vector<8x8x32xf32>
    %4 = arith.mulf %0, %3 : vector<8x8x32xf32>
    "tpu.trace_start"() <{level = 10 : i32, message = "bqd,bkd->bqk"}> : () -> ()
    %cst_8 = arith.constant dense<0.000000e+00> : vector<8x8x8xf32>
    %5 = tpu.matmul %4, %1, %cst_8 {dimension_numbers = #tpu.dot_dimension_numbers<[2], [2], [1], [1], [0, 0, 0, 1, 1, 1], [0], [0]>} : vector<8x8x32xf32>, vector<8x8x32xf32>, vector<8x8x8xf32> -> vector<8x8x8xf32>
    "tpu.trace_stop"() : () -> ()
    %cst_9 = arith.constant dense<0xFF800000> : vector<8x8xf32>
    %6 = vector.multi_reduction <maximumf>, %5, %cst_9 [2] : vector<8x8x8xf32> to vector<8x8xf32>
    %7 = vector.shape_cast %6 : vector<8x8xf32> to vector<8x8x1xf32>
    %8 = vector.broadcast %7 : vector<8x8x1xf32> to vector<8x8x8xf32>
    %9 = arith.subf %5, %8 : vector<8x8x8xf32>
    %10 = math.exp %9 : vector<8x8x8xf32>
    %cst_10 = arith.constant dense<0.000000e+00> : vector<8x8xf32>
    %11 = vector.multi_reduction <add>, %10, %cst_10 [2] : vector<8x8x8xf32> to vector<8x8xf32>
    %12 = vector.shape_cast %11 : vector<8x8xf32> to vector<8x8x1xf32>
    %13 = tpu.reciprocal %12 : vector<8x8x1xf32> -> vector<8x8x1xf32>
    %14 = vector.broadcast %13 : vector<8x8x1xf32> to vector<8x8x8xf32>
    %15 = arith.mulf %10, %14 : vector<8x8x8xf32>
    %c0_11 = arith.constant 0 : index
    %c0_12 = arith.constant 0 : index
    %c0_13 = arith.constant 0 : index
    %16 = vector.load %arg5[%c0_11, %c0_12, %c0_13] : memref<8x8x8xf32, #tpu.memory_space<vmem>>, vector<8x8x8xf32>
    tpu.vector_store %arg5[%c0_11, %c0_12, %c0_13], %15 {strides = array<i32>} : memref<8x8x8xf32, #tpu.memory_space<vmem>>, vector<8x8x8xf32>,
    "tpu.trace_start"() <{level = 10 : i32, message = "bqk,bkd->bqd"}> : () -> ()
    %cst_14 = arith.constant dense<0.000000e+00> : vector<8x8x32xf32>
    %17 = tpu.matmul %15, %2, %cst_14 {dimension_numbers = #tpu.dot_dimension_numbers<[2], [1], [1], [2], [0, 0, 0, 1, 1, 2], [0], [0]>} : vector<8x8x8xf32>, vector<8x8x32xf32>, vector<8x8x32xf32> -> vector<8x8x32xf32>
    "tpu.trace_stop"() : () -> ()
    %18 = vector.shape_cast %17 : vector<8x8x32xf32> to vector<8x256xf32>
    %c0_15 = arith.constant 0 : index
    %c0_16 = arith.constant 0 : index
    %19 = vector.load %arg4[%c0_15, %c0_16] : memref<8x256xf32, #tpu.memory_space<vmem>>, vector<8x256xf32>
    tpu.vector_store %arg4[%c0_15, %c0_16], %18 {strides = array<i32>} : memref<8x256xf32, #tpu.memory_space<vmem>>, vector<8x256xf32>,
    return
  }
  func.func @transform_0(%arg0: i32) -> (i32, i32, i32) {
    %c0_i32 = arith.constant 0 : i32
    %c0_i32_0 = arith.constant 0 : i32
    %c0_i32_1 = arith.constant 0 : i32
    return %arg0, %c0_i32, %c0_i32_0 : i32, i32, i32
  }
  func.func @transform_1(%arg0: i32) -> (i32, i32, i32) {
    %c0_i32 = arith.constant 0 : i32
    %c0_i32_0 = arith.constant 0 : i32
    %c0_i32_1 = arith.constant 0 : i32
    return %arg0, %c0_i32, %c0_i32_0 : i32, i32, i32
  }
  func.func @transform_2(%arg0: i32) -> (i32, i32, i32) {
    %c0_i32 = arith.constant 0 : i32
    %c0_i32_0 = arith.constant 0 : i32
    %c0_i32_1 = arith.constant 0 : i32
    return %arg0, %c0_i32, %c0_i32_0 : i32, i32, i32
  }
  func.func @transform_3(%arg0: i32) -> (i32, i32) {
    %c0_i32 = arith.constant 0 : i32
    %c0_i32_0 = arith.constant 0 : i32
    return %arg0, %c0_i32 : i32, i32
  }
  func.func @transform_4(%arg0: i32) -> (i32, i32, i32) {
    %c0_i32 = arith.constant 0 : i32
    %c0_i32_0 = arith.constant 0 : i32
    %c0_i32_1 = arith.constant 0 : i32
    return %arg0, %c0_i32, %c0_i32_0 : i32, i32, i32
  }
}

</mosaic_0001>

<llo_original>
// kernel: tpu_custom_call.1
$region0: #{tpu_custom_call.1}
  #allocation0 [shape = 'u32[]', space=smem, size = 0x4, offset = 0x4, fixed_abs, tag = 'smem constant byte address 0x4 - core index']
  #allocation1 [shape = 'u32[144,128]{1,0:T(1,128)}', space=vmem, size = 0x12000, scoped, tag = 'internal scratch']
  %s0 = inlined_call_operand.hbm [shape: f32[16,8,32], index: 0, kind: input, shape index: {}]
  %s1 = inlined_call_operand.hbm [shape: f32[16,8,32], index: 1, kind: input, shape index: {}]
  %s2 = inlined_call_operand.hbm [shape: f32[16,8,32], index: 2, kind: input, shape index: {}]
  %s3 = inlined_call_operand.hbm [shape: f32[16,256], index: 3, kind: output, shape index: {0}]
  %s4 = inlined_call_operand.vmem [shape: f32[16,8,8], index: 4, kind: output, shape index: {1}]
  %5 = xla_tuple %s3, %s4
  %s6 = sld [smem:[#allocation0]]
  $region65: #{tpu_custom_call.1} parent=0
    _
  %s8 = ssub.s32 1, %s6
  %s9 = scalar_select 0, %s8, %s6
  $region1: #{tpu_custom_call.1} parent=0
    #allocation2 [shape = 'u8[65536]{0}', space=vmem, size = 0x10000, scoped, tag = 'input window, operand 0']
    #allocation3 [shape = 's32[2]{0}', space=sflag, size = 0x8, scoped, tag = 'scoped memory for tpu_custom_call.1']
    #allocation4 [shape = 's32[2]{0}', space=sflag, size = 0x8, scoped, tag = 'scoped memory for tpu_custom_call.1']
    #allocation5 [shape = 'u8[65536]{0}', space=vmem, size = 0x10000, scoped, tag = 'input window, operand 1']
    #allocation6 [shape = 's32[2]{0}', space=sflag, size = 0x8, scoped, tag = 'scoped memory for tpu_custom_call.1']
    #allocation7 [shape = 'u8[65536]{0}', space=vmem, size = 0x10000, scoped, tag = 'input window, operand 2']
    #allocation8 [shape = 'u8[16384]{0}', space=vmem, size = 0x4000, scoped, tag = 'output window, operand 0']
    %10 = vsyncpa [#allocation3], 0
    %s11 = scalar_lea.sflag [#allocation3], 1
    %12 = vsyncpa %s11, 0
    %13 = vsyncpa [#allocation6], 0
    %s14 = scalar_lea.sflag [#allocation6], 1
    %15 = vsyncpa %s14, 0
    %16 = vsyncpa [#allocation4], 0
    %s17 = scalar_lea.sflag [#allocation4], 1
    %18 = vsyncpa %s17, 0
    loop: start=0, step=1, limit=4
    $region2: #{tpu_custom_call.1} parent=1 // loop_pre_header
      _
    $region3: #{tpu_custom_call.1} parent=1 // loop_header
      %s20 = sphi 0, %s24
      %p21 = scmp.ge.s32.totalorder %s20, 4
      %s30 = sphi 0, %s32
      %s33 = sphi 0, %s30
      %s34 = sphi 0, %s33
      %s50 = sphi 0, %s34
      %s56 = sphi 0, %s58
      %s59 = sphi 0, %s56
      %s60 = sphi 0, %s59
      %s76 = sphi 0, %s60
      %s82 = sphi 0, %s84
      %s85 = sphi 0, %s82
      %s86 = sphi 0, %s85
      %s102 = sphi 0, %s86
      %s108 = sphi 0, %s110
      %s111 = sphi 0, %s108
      %s112 = sphi 0, %s111
      %s128 = sphi 0, %s112
      %s134 = sphi 0, %s136
      %s137 = sphi 0, %s134
      %s138 = sphi 0, %s137
      %s154 = sphi 0, %s138
    $region4: #{tpu_custom_call.1} parent=1 // loop_header_branch
      %23 = sbr.rel (%p21) target = $region8
    $region5: #{tpu_custom_call.1} parent=1 // loop_body
      %s25 = ssub.s32 %s20, 1
      %s26 = ssub.s32 %s20, 2
      %s27 = sadd.s32 %s20, 1
      %s28 = ssub.s32 %s20, %s27
      %p29 = scmp.eq.s32.totalorder %s28, 0
      %s31 = sadd.s32 %s30, 1
      %s32 = scalar_select %p29, %s30, %s31
      %p35 = pneg %p29
      %p36 = scmp.eq.s32.totalorder %s20, 1
      %p37 = por %p35, %p36
      %p38 = scmp.ne.s32.totalorder %s30, %s33
      %p39 = scmp.eq.s32.totalorder %s20, 0
      %p40 = por %p38, %p39
      %p41 = scmp.ne.s32.totalorder %s30, %s33
      %p42 = scmp.eq.s32.totalorder %s25, 1
      %p43 = por %p41, %p42
      %p44 = scmp.ne.s32.totalorder %s33, %s34
      %p45 = scmp.eq.s32.totalorder %s25, 0
      %p46 = por %p44, %p45
      %p47 = scmp.ne.s32.totalorder %s33, %s34
      %p48 = scmp.eq.s32.totalorder %s26, 1
      %p49 = por %p47, %p48
      %p51 = scmp.ne.s32.totalorder %s34, %s50
      %p52 = scmp.eq.s32.totalorder %s26, 0
      %p53 = por %p51, %p52
      %s54 = ssub.s32 %s20, %s27
      %p55 = scmp.eq.s32.totalorder %s54, 0
      %s57 = sadd.s32 %s56, 1
      %s58 = scalar_select %p55, %s56, %s57
      %p61 = pneg %p55
      %p62 = scmp.eq.s32.totalorder %s20, 1
      %p63 = por %p61, %p62
      %p64 = scmp.ne.s32.totalorder %s56, %s59
      %p65 = scmp.eq.s32.totalorder %s20, 0
      %p66 = por %p64, %p65
      %p67 = scmp.ne.s32.totalorder %s56, %s59
      %p68 = scmp.eq.s32.totalorder %s25, 1
      %p69 = por %p67, %p68
      %p70 = scmp.ne.s32.totalorder %s59, %s60
      %p71 = scmp.eq.s32.totalorder %s25, 0
      %p72 = por %p70, %p71
      %p73 = scmp.ne.s32.totalorder %s59, %s60
      %p74 = scmp.eq.s32.totalorder %s26, 1
      %p75 = por %p73, %p74
      %p77 = scmp.ne.s32.totalorder %s60, %s76
      %p78 = scmp.eq.s32.totalorder %s26, 0
      %p79 = por %p77, %p78
      %s80 = ssub.s32 %s20, %s27
      %p81 = scmp.eq.s32.totalorder %s80, 0
      %s83 = sadd.s32 %s82, 1
      %s84 = scalar_select %p81, %s82, %s83
      %p87 = pneg %p81
      %p88 = scmp.eq.s32.totalorder %s20, 1
      %p89 = por %p87, %p88
      %p90 = scmp.ne.s32.totalorder %s82, %s85
      %p91 = scmp.eq.s32.totalorder %s20, 0
      %p92 = por %p90, %p91
      %p93 = scmp.ne.s32.totalorder %s82, %s85
      %p94 = scmp.eq.s32.totalorder %s25, 1
      %p95 = por %p93, %p94
      %p96 = scmp.ne.s32.totalorder %s85, %s86
      %p97 = scmp.eq.s32.totalorder %s25, 0
      %p98 = por %p96, %p97
      %p99 = scmp.ne.s32.totalorder %s85, %s86
      %p100 = scmp.eq.s32.totalorder %s26, 1
      %p101 = por %p99, %p100
      %p103 = scmp.ne.s32.totalorder %s86, %s102
      %p104 = scmp.eq.s32.totalorder %s26, 0
      %p105 = por %p103, %p104
      %s106 = ssub.s32 %s20, %s27
      %p107 = scmp.eq.s32.totalorder %s106, 0
      %s109 = sadd.s32 %s108, 1
      %s110 = scalar_select %p107, %s108, %s109
      %p113 = pneg %p107
      %p114 = scmp.eq.s32.totalorder %s20, 1
      %p115 = por %p113, %p114
      %p116 = scmp.ne.s32.totalorder %s108, %s111
      %p117 = scmp.eq.s32.totalorder %s20, 0
      %p118 = por %p116, %p117
      %p119 = scmp.ne.s32.totalorder %s108, %s111
      %p120 = scmp.eq.s32.totalorder %s25, 1
      %p121 = por %p119, %p120
      %p122 = scmp.ne.s32.totalorder %s111, %s112
      %p123 = scmp.eq.s32.totalorder %s25, 0
      %p124 = por %p122, %p123
      %p125 = scmp.ne.s32.totalorder %s111, %s112
      %p126 = scmp.eq.s32.totalorder %s26, 1
      %p127 = por %p125, %p126
      %p129 = scmp.ne.s32.totalorder %s112, %s128
      %p130 = scmp.eq.s32.totalorder %s26, 0
      %p131 = por %p129, %p130
      %s132 = ssub.s32 %s20, %s27
      %p133 = scmp.eq.s32.totalorder %s132, 0
      %s135 = sadd.s32 %s134, 1
      %s136 = scalar_select %p133, %s134, %s135
      %p139 = pneg %p133
      %p140 = scmp.eq.s32.totalorder %s20, 1
      %p141 = por %p139, %p140
      %p142 = scmp.ne.s32.totalorder %s134, %s137
      %p143 = scmp.eq.s32.totalorder %s20, 0
      %p144 = por %p142, %p143
      %p145 = scmp.ne.s32.totalorder %s134, %s137
      %p146 = scmp.eq.s32.totalorder %s25, 1
      %p147 = por %p145, %p146
      %p148 = scmp.ne.s32.totalorder %s137, %s138
      %p149 = scmp.eq.s32.totalorder %s25, 0
      %p150 = por %p148, %p149
      %p151 = scmp.ne.s32.totalorder %s137, %s138
      %p152 = scmp.eq.s32.totalorder %s26, 1
      %p153 = por %p151, %p152
      %p155 = scmp.ne.s32.totalorder %s138, %s154
      %p156 = scmp.eq.s32.totalorder %s26, 0
      %p157 = por %p155, %p156
      %p158 = scmp.le.s32.totalorder 1, %s20
      %p159 = scmp.lt.s32.totalorder %s20, 3
      %p160 = pnand %p158, %p159
      %p161 = pneg %p160
      // Predicated region
      $region9: #{tpu_custom_call.1} parent=5 // pred_check
        _
      $region10: #{tpu_custom_call.1} parent=5 // pred_check_branch
        %163 = sbr.rel (%p160) target = $region12
      $region11: #{tpu_custom_call.1} parent=5 // pred_region
        %s164 = ssub.s32 %s20, 1
      $region12: #{tpu_custom_call.1} parent=5 // pred_fallthru
        _
      %p165 = scmp.lt.s32.totalorder %s20, 2
      // Predicated region
      $region13: #{tpu_custom_call.1} parent=5 // pred_check
        %p166 = pneg %p165
      $region14: #{tpu_custom_call.1} parent=5 // pred_check_branch
        %168 = sbr.rel (%p166) target = $region16
      $region15: #{tpu_custom_call.1} parent=5 // pred_region
        // Predicated region
        $region17: #{tpu_custom_call.1} parent=15 // pred_check
          %p169 = pneg %p40
        $region18: #{tpu_custom_call.1} parent=15 // pred_check_branch
          %171 = sbr.rel (%p169) target = $region20
        $region19: #{tpu_custom_call.1} parent=15 // pred_region
          %s172 = sand.u32 %s30, 1
          %s173 = scalar_lea.sflag [#allocation3], %s172
          %s174 = sand.u32 %s30, 1
          %s175 = smul.addr %s174, 64
          %s176 = scalar_lea.vmem [#allocation2], %s175
          %s177 = smul.u32 8, %s20
          %s179 = ssub.s32 1024, 1024
          %180 = vsyncadd %s173, %s179
          %s181 = smul.addr %s177, 128
          %s182 = scalar_lea.hbm %s0, %s181
          %s183 = sshll.u32 %s176, 4
          %s184 = int_to_ptr.vmem [resolvable:$true] %s183
          %189 = dma.hbm_to_vmem [thread:$0]  %s182, 1024, %s184, %s173, 128, 128, 8
        $region20: #{tpu_custom_call.1} parent=15 // pred_fallthru
          _
        // Predicated region
        $region21: #{tpu_custom_call.1} parent=15 // pred_check
          %p190 = pneg %p66
        $region22: #{tpu_custom_call.1} parent=15 // pred_check_branch
          %192 = sbr.rel (%p190) target = $region24
        $region23: #{tpu_custom_call.1} parent=15 // pred_region
          %s193 = sand.u32 %s20, 1
          %s194 = scalar_lea.sflag [#allocation6], %s193
          %s195 = sand.u32 %s56, 1
          %s196 = smul.addr %s195, 64
          %s197 = scalar_lea.vmem [#allocation5], %s196
          %s198 = smul.u32 8, %s20
          %s200 = ssub.s32 1024, 1024
          %201 = vsyncadd %s194, %s200
          %s202 = smul.addr %s198, 128
          %s203 = scalar_lea.hbm %s1, %s202
          %s204 = sshll.u32 %s197, 4
          %s205 = int_to_ptr.vmem [resolvable:$true] %s204
          %210 = dma.hbm_to_vmem [thread:$0]  %s203, 1024, %s205, %s194, 128, 128, 8
        $region24: #{tpu_custom_call.1} parent=15 // pred_fallthru
          _
        // Predicated region
        $region25: #{tpu_custom_call.1} parent=15 // pred_check
          %p211 = pneg %p92
        $region26: #{tpu_custom_call.1} parent=15 // pred_check_branch
          %213 = sbr.rel (%p211) target = $region28
        $region27: #{tpu_custom_call.1} parent=15 // pred_region
          %s214 = sand.u32 %s20, 1
          %s215 = scalar_lea.sflag [#allocation6], %s214
          %s216 = sand.u32 %s82, 1
          %s217 = smul.addr %s216, 64
          %s218 = scalar_lea.vmem [#allocation7], %s217
          %s219 = smul.u32 8, %s20
          %s221 = ssub.s32 1024, 1024
          %222 = vsyncadd %s215, %s221
          %s223 = smul.addr %s219, 128
          %s224 = scalar_lea.hbm %s2, %s223
          %s225 = sshll.u32 %s218, 4
          %s226 = int_to_ptr.vmem [resolvable:$true] %s225
          %231 = dma.hbm_to_vmem [thread:$0]  %s224, 1024, %s226, %s215, 128, 128, 8
        $region28: #{tpu_custom_call.1} parent=15 // pred_fallthru
          _
      $region16: #{tpu_custom_call.1} parent=5 // pred_fallthru
        _
      %p232 = scmp.le.s32.totalorder 1, %s20
      %p233 = scmp.lt.s32.totalorder %s20, 3
      %p234 = pnand %p232, %p233
      %p235 = pneg %p234
      // Predicated region
      $region29: #{tpu_custom_call.1} parent=5 // pred_check
        _
      $region30: #{tpu_custom_call.1} parent=5 // pred_check_branch
        %237 = sbr.rel (%p234) target = $region32
      $region31: #{tpu_custom_call.1} parent=5 // pred_region
        %s238 = ssub.s32 %s20, 1
        %s239 = sand.u32 %s33, 1
        %s240 = scalar_lea.sflag [#allocation3], %s239
        %s241 = sand.u32 %s33, 1
        %s242 = smul.addr %s241, 64
        %s243 = scalar_lea.vmem [#allocation2], %s242
        // Predicated region
        $region33: #{tpu_custom_call.1} parent=31 // pred_check
          %p244 = pneg %p46
        $region34: #{tpu_custom_call.1} parent=31 // pred_check_branch
          %246 = sbr.rel (%p244) target = $region36
        $region35: #{tpu_custom_call.1} parent=31 // pred_region
          %247 = dma.done %s240, 1024
        $region36: #{tpu_custom_call.1} parent=31 // pred_fallthru
          _
        %s248 = sand.u32 %s25, 1
        %s249 = scalar_lea.sflag [#allocation6], %s248
        %s250 = sand.u32 %s59, 1
        %s251 = smul.addr %s250, 64
        %s252 = scalar_lea.vmem [#allocation5], %s251
        // Predicated region
        $region37: #{tpu_custom_call.1} parent=31 // pred_check
          %p253 = pneg %p72
        $region38: #{tpu_custom_call.1} parent=31 // pred_check_branch
          %255 = sbr.rel (%p253) target = $region40
        $region39: #{tpu_custom_call.1} parent=31 // pred_region
          %256 = dma.done %s249, 1024
        $region40: #{tpu_custom_call.1} parent=31 // pred_fallthru
          _
        %s257 = sand.u32 %s25, 1
        %s258 = scalar_lea.sflag [#allocation6], %s257
        %s259 = sand.u32 %s85, 1
        %s260 = smul.addr %s259, 64
        %s261 = scalar_lea.vmem [#allocation7], %s260
        // Predicated region
        $region41: #{tpu_custom_call.1} parent=31 // pred_check
          %p262 = pneg %p98
        $region42: #{tpu_custom_call.1} parent=31 // pred_check_branch
          %264 = sbr.rel (%p262) target = $region44
        $region43: #{tpu_custom_call.1} parent=31 // pred_region
          %265 = dma.done %s258, 1024
        $region44: #{tpu_custom_call.1} parent=31 // pred_fallthru
          _
        %s266 = sand.u32 %s33, 1
        %s267 = scalar_lea.sflag [#allocation3], %s266
        %s268 = sand.u32 %s33, 1
        %s269 = smul.addr %s268, 64
        %s270 = scalar_lea.vmem [#allocation2], %s269
        %p271 = pneg %p46
        %p272 = pneg %p43
        %s273 = sand.u32 %s25, 1
        %s274 = scalar_lea.sflag [#allocation6], %s273
        %s275 = sand.u32 %s59, 1
        %s276 = smul.addr %s275, 64
        %s277 = scalar_lea.vmem [#allocation5], %s276
        %p278 = pneg %p72
        %p279 = pneg %p69
        %s280 = sand.u32 %s25, 1
        %s281 = scalar_lea.sflag [#allocation6], %s280
        %s282 = sand.u32 %s85, 1
        %s283 = smul.addr %s282, 64
        %s284 = scalar_lea.vmem [#allocation7], %s283
        %p285 = pneg %p98
        %p286 = pneg %p95
        %p287 = pneg %p124
        %p288 = pneg %p121
        %s289 = sand.u32 %s111, 1
        %s290 = scalar_lea.sflag [#allocation4], %s289
        %s291 = sand.u32 %s111, 1
        %s292 = smul.addr %s291, 16
        %s293 = scalar_lea.vmem [#allocation8], %s292
        %p294 = pneg %p150
        %p295 = pneg %p147
        %s296 = smul.u32 8, %s25
        %p297 = scmp.lt.s32.totalorder %s296, 15
        %s298 = scalar_select %p297, %s296, 15
        %s299 = smul.addr %s298, 8
        %s300 = scalar_lea.vmem %s4, %s299
        %s301 = smul.u32 8, %s25
        %s302 = smul.u32 8, %s25
        %s303 = smul.u32 8, %s25
        %s304 = smul.u32 8, %s25
        %p305 = scmp.lt.s32.totalorder %s304, 15
        %s306 = scalar_select %p305, %s304, 15
        %s307 = smul.addr %s306, 8
        %s308 = scalar_lea.vmem %s4, %s307
        %s309 = smul.u32 8, %s25
        %v310 = vld [vmem:[%s243] sm:$0xff]
        %v311 = vld [vmem:[%s243 + $0x8] sm:$0xff]
        %v312 = vld [vmem:[%s243 + $0x10] sm:$0xff]
        %v313 = vld [vmem:[%s243 + $0x18] sm:$0xff]
        %v314 = vld [vmem:[%s243 + $0x20] sm:$0xff]
        %v315 = vld [vmem:[%s243 + $0x28] sm:$0xff]
        %v316 = vld [vmem:[%s243 + $0x30] sm:$0xff]
        %v317 = vld [vmem:[%s243 + $0x38] sm:$0xff]
        %v318 = vld [vmem:[%s252] sm:$0xff]
        %v319 = vld [vmem:[%s252 + $0x8] sm:$0xff]
        %v320 = vld [vmem:[%s252 + $0x10] sm:$0xff]
        %v321 = vld [vmem:[%s252 + $0x18] sm:$0xff]
        %v322 = vld [vmem:[%s252 + $0x20] sm:$0xff]
        %v323 = vld [vmem:[%s252 + $0x28] sm:$0xff]
        %v324 = vld [vmem:[%s252 + $0x30] sm:$0xff]
        %v325 = vld [vmem:[%s252 + $0x38] sm:$0xff]
        %v326 = vld [vmem:[%s261] sm:$0xff]
        %v327 = vld [vmem:[%s261 + $0x8] sm:$0xff]
        %v328 = vld [vmem:[%s261 + $0x10] sm:$0xff]
        %v329 = vld [vmem:[%s261 + $0x18] sm:$0xff]
        %v330 = vld [vmem:[%s261 + $0x20] sm:$0xff]
        %v331 = vld [vmem:[%s261 + $0x28] sm:$0xff]
        %v332 = vld [vmem:[%s261 + $0x30] sm:$0xff]
        %v333 = vld [vmem:[%s261 + $0x38] sm:$0xff]
        %v334 = vmul.f32 %v310, 0.17677669
        %v335 = vmul.f32 %v311, 0.17677669
        %v336 = vmul.f32 %v312, 0.17677669
        %v337 = vmul.f32 %v313, 0.17677669
        %v338 = vmul.f32 %v314, 0.17677669
        %v339 = vmul.f32 %v315, 0.17677669
        %v340 = vmul.f32 %v316, 0.17677669
        %v341 = vmul.f32 %v317, 0.17677669
        %vm342 = vcmask 261120
        %v344 = vsel %vm342, %v334, 0
        %v347 = vsel %vm342, %v318, 0
        %349 = vmatprep.subr.mxu0 0.0
        %350 = vmatpush1.xpose.msra.mxu0 0.0
        %351 = vmatprep.subr.mxu0 0.0
        %352 = vmatpush1.xpose.msra.mxu0 0.0
        %353 = vmatprep.subr.mxu0 0.0
        %354 = vmatpush1.xpose.msra.mxu0 0.0
        %355 = vmatprep.subr.mxu0 0.0
        %356 = vmatpush1.xpose.msra.mxu0 0.0
        %357 = vmatprep.subr.mxu0 0.0
        %358 = vmatpush1.xpose.msra.mxu0 0.0
        %359 = vmatprep.subr.mxu0 0.0
        %360 = vmatpush1.xpose.msra.mxu0 0.0
        %361 = vmatprep.subr.mxu0 0.0
        %362 = vmatpush1.xpose.msra.mxu0 0.0
        %363 = vmatprep.subr.mxu0 0.0
        %364 = vmatpush1.xpose.msra.mxu0 0.0
        %365 = vmatprep.subr.mxu0 0.0
        %366 = vmatpush1.xpose.msra.mxu0 0.0
        %367 = vmatprep.subr.mxu0 0.0
        %368 = vmatpush1.xpose.msra.mxu0 0.0
        %369 = vmatprep.subr.mxu0 0.0
        %370 = vmatpush1.xpose.msra.mxu0 0.0
        %371 = vmatprep.subr.mxu0 0.0
        %372 = vmatpush1.xpose.msra.mxu0 0.0
        %373 = vmatprep.subr.mxu0 0.0
        %374 = vmatpush1.xpose.msra.mxu0 0.0
        %375 = vmatprep.subr.mxu0 0.0
        %376 = vmatpush1.xpose.msra.mxu0 0.0
        %377 = vmatprep.subr.mxu0 0.0
        %378 = vmatpush1.xpose.msra.mxu0 0.0
        %379 = vmatprep.subr.mxu0 0.0
        %380 = vmatpush1.xpose.msra.mxu0 %v347
        %381 = vmatprep.subr.mxu0 0.0
        %382 = vmatpush2.xpose.msra.mxu0 0.0
        %383 = vmatprep.subr.mxu0 0.0
        %384 = vmatpush2.xpose.msra.mxu0 0.0
        %385 = vmatprep.subr.mxu0 0.0
        %386 = vmatpush2.xpose.msra.mxu0 0.0
        %387 = vmatprep.subr.mxu0 0.0
        %388 = vmatpush2.xpose.msra.mxu0 0.0
        %389 = vmatprep.subr.mxu0 0.0
        %390 = vmatpush2.xpose.msra.mxu0 0.0
        %391 = vmatprep.subr.mxu0 0.0
        %392 = vmatpush2.xpose.msra.mxu0 0.0
        %393 = vmatprep.subr.mxu0 0.0
        %394 = vmatpush2.xpose.msra.mxu0 0.0
        %395 = vmatprep.subr.mxu0 0.0
        %396 = vmatpush2.xpose.msra.mxu0 0.0
        %397 = vmatprep.subr.mxu0 0.0
        %398 = vmatpush2.xpose.msra.mxu0 0.0
        %399 = vmatprep.subr.mxu0 0.0
        %400 = vmatpush2.xpose.msra.mxu0 0.0
        %401 = vmatprep.subr.mxu0 0.0
        %402 = vmatpush2.xpose.msra.mxu0 0.0
        %403 = vmatprep.subr.mxu0 0.0
        %404 = vmatpush2.xpose.msra.mxu0 0.0
        %405 = vmatprep.subr.mxu0 0.0
        %406 = vmatpush2.xpose.msra.mxu0 0.0
        %407 = vmatprep.subr.mxu0 0.0
        %408 = vmatpush2.xpose.msra.mxu0 0.0
        %409 = vmatprep.subr.mxu0 0.0
        %410 = vmatpush2.xpose.msra.mxu0 0.0
        %411 = vmatprep.subr.mxu0 0.0
        %412 = vmatpush2.xpose.msra.mxu0 0.0
        %413 = vmatprep.mubr.f32.mxu0 0.0
        %414 = vmatmul.mubr.f32.gmra.mxu0 %v344
        %v415 = vpop.f32.mrf.mxu0
        %v416 = vadd.f32 0.0, %v415
        %v417 = vpop.f32.mrf.mxu0
        %418 = vdwg.mxu0
        %v420 = vsel %vm342, %v335, 0
        %v423 = vsel %vm342, %v319, 0
        %425 = vmatprep.subr.mxu0 0.0
        %426 = vmatpush1.xpose.msra.mxu0 0.0
        %427 = vmatprep.subr.mxu0 0.0
        %428 = vmatpush1.xpose.msra.mxu0 0.0
        %429 = vmatprep.subr.mxu0 0.0
        %430 = vmatpush1.xpose.msra.mxu0 0.0
        %431 = vmatprep.subr.mxu0 0.0
        %432 = vmatpush1.xpose.msra.mxu0 0.0
        %433 = vmatprep.subr.mxu0 0.0
        %434 = vmatpush1.xpose.msra.mxu0 0.0
        %435 = vmatprep.subr.mxu0 0.0
        %436 = vmatpush1.xpose.msra.mxu0 0.0
        %437 = vmatprep.subr.mxu0 0.0
        %438 = vmatpush1.xpose.msra.mxu0 0.0
        %439 = vmatprep.subr.mxu0 0.0
        %440 = vmatpush1.xpose.msra.mxu0 0.0
        %441 = vmatprep.subr.mxu0 0.0
        %442 = vmatpush1.xpose.msra.mxu0 0.0
        %443 = vmatprep.subr.mxu0 0.0
        %444 = vmatpush1.xpose.msra.mxu0 0.0
        %445 = vmatprep.subr.mxu0 0.0
        %446 = vmatpush1.xpose.msra.mxu0 0.0
        %447 = vmatprep.subr.mxu0 0.0
        %448 = vmatpush1.xpose.msra.mxu0 0.0
        %449 = vmatprep.subr.mxu0 0.0
        %450 = vmatpush1.xpose.msra.mxu0 0.0
        %451 = vmatprep.subr.mxu0 0.0
        %452 = vmatpush1.xpose.msra.mxu0 0.0
        %453 = vmatprep.subr.mxu0 0.0
        %454 = vmatpush1.xpose.msra.mxu0 0.0
        %455 = vmatprep.subr.mxu0 0.0
        %456 = vmatpush1.xpose.msra.mxu0 %v423
        %457 = vmatprep.subr.mxu0 0.0
        %458 = vmatpush2.xpose.msra.mxu0 0.0
        %459 = vmatprep.subr.mxu0 0.0
        %460 = vmatpush2.xpose.msra.mxu0 0.0
        %461 = vmatprep.subr.mxu0 0.0
        %462 = vmatpush2.xpose.msra.mxu0 0.0
        %463 = vmatprep.subr.mxu0 0.0
        %464 = vmatpush2.xpose.msra.mxu0 0.0
        %465 = vmatprep.subr.mxu0 0.0
        %466 = vmatpush2.xpose.msra.mxu0 0.0
        %467 = vmatprep.subr.mxu0 0.0
        %468 = vmatpush2.xpose.msra.mxu0 0.0
        %469 = vmatprep.subr.mxu0 0.0
        %470 = vmatpush2.xpose.msra.mxu0 0.0
        %471 = vmatprep.subr.mxu0 0.0
        %472 = vmatpush2.xpose.msra.mxu0 0.0
        %473 = vmatprep.subr.mxu0 0.0
        %474 = vmatpush2.xpose.msra.mxu0 0.0
        %475 = vmatprep.subr.mxu0 0.0
        %476 = vmatpush2.xpose.msra.mxu0 0.0
        %477 = vmatprep.subr.mxu0 0.0
        %478 = vmatpush2.xpose.msra.mxu0 0.0
        %479 = vmatprep.subr.mxu0 0.0
        %480 = vmatpush2.xpose.msra.mxu0 0.0
        %481 = vmatprep.subr.mxu0 0.0
        %482 = vmatpush2.xpose.msra.mxu0 0.0
        %483 = vmatprep.subr.mxu0 0.0
        %484 = vmatpush2.xpose.msra.mxu0 0.0
        %485 = vmatprep.subr.mxu0 0.0
        %486 = vmatpush2.xpose.msra.mxu0 0.0
        %487 = vmatprep.subr.mxu0 0.0
        %488 = vmatpush2.xpose.msra.mxu0 0.0
        %489 = vmatprep.mubr.f32.mxu0 0.0
        %490 = vmatmul.mubr.f32.gmra.mxu0 %v420
        %v491 = vpop.f32.mrf.mxu0
        %v492 = vadd.f32 0.0, %v491
        %v493 = vpop.f32.mrf.mxu0
        %494 = vdwg.mxu0
        %v496 = vsel %vm342, %v336, 0
        %v499 = vsel %vm342, %v320, 0
        %501 = vmatprep.subr.mxu0 0.0
        %502 = vmatpush1.xpose.msra.mxu0 0.0
        %503 = vmatprep.subr.mxu0 0.0
        %504 = vmatpush1.xpose.msra.mxu0 0.0
        %505 = vmatprep.subr.mxu0 0.0
        %506 = vmatpush1.xpose.msra.mxu0 0.0
        %507 = vmatprep.subr.mxu0 0.0
        %508 = vmatpush1.xpose.msra.mxu0 0.0
        %509 = vmatprep.subr.mxu0 0.0
        %510 = vmatpush1.xpose.msra.mxu0 0.0
        %511 = vmatprep.subr.mxu0 0.0
        %512 = vmatpush1.xpose.msra.mxu0 0.0
        %513 = vmatprep.subr.mxu0 0.0
        %514 = vmatpush1.xpose.msra.mxu0 0.0
        %515 = vmatprep.subr.mxu0 0.0
        %516 = vmatpush1.xpose.msra.mxu0 0.0
        %517 = vmatprep.subr.mxu0 0.0
        %518 = vmatpush1.xpose.msra.mxu0 0.0
        %519 = vmatprep.subr.mxu0 0.0
        %520 = vmatpush1.xpose.msra.mxu0 0.0
        %521 = vmatprep.subr.mxu0 0.0
        %522 = vmatpush1.xpose.msra.mxu0 0.0
        %523 = vmatprep.subr.mxu0 0.0
        %524 = vmatpush1.xpose.msra.mxu0 0.0
        %525 = vmatprep.subr.mxu0 0.0
        %526 = vmatpush1.xpose.msra.mxu0 0.0
        %527 = vmatprep.subr.mxu0 0.0
        %528 = vmatpush1.xpose.msra.mxu0 0.0
        %529 = vmatprep.subr.mxu0 0.0
        %530 = vmatpush1.xpose.msra.mxu0 0.0
        %531 = vmatprep.subr.mxu0 0.0
        %532 = vmatpush1.xpose.msra.mxu0 %v499
        %533 = vmatprep.subr.mxu0 0.0
        %534 = vmatpush2.xpose.msra.mxu0 0.0
        %535 = vmatprep.subr.mxu0 0.0
        %536 = vmatpush2.xpose.msra.mxu0 0.0
        %537 = vmatprep.subr.mxu0 0.0
        %538 = vmatpush2.xpose.msra.mxu0 0.0
        %539 = vmatprep.subr.mxu0 0.0
        %540 = vmatpush2.xpose.msra.mxu0 0.0
        %541 = vmatprep.subr.mxu0 0.0
        %542 = vmatpush2.xpose.msra.mxu0 0.0
        %543 = vmatprep.subr.mxu0 0.0
        %544 = vmatpush2.xpose.msra.mxu0 0.0
        %545 = vmatprep.subr.mxu0 0.0
        %546 = vmatpush2.xpose.msra.mxu0 0.0
        %547 = vmatprep.subr.mxu0 0.0
        %548 = vmatpush2.xpose.msra.mxu0 0.0
        %549 = vmatprep.subr.mxu0 0.0
        %550 = vmatpush2.xpose.msra.mxu0 0.0
        %551 = vmatprep.subr.mxu0 0.0
        %552 = vmatpush2.xpose.msra.mxu0 0.0
        %553 = vmatprep.subr.mxu0 0.0
        %554 = vmatpush2.xpose.msra.mxu0 0.0
        %555 = vmatprep.subr.mxu0 0.0
        %556 = vmatpush2.xpose.msra.mxu0 0.0
        %557 = vmatprep.subr.mxu0 0.0
        %558 = vmatpush2.xpose.msra.mxu0 0.0
        %559 = vmatprep.subr.mxu0 0.0
        %560 = vmatpush2.xpose.msra.mxu0 0.0
        %561 = vmatprep.subr.mxu0 0.0
        %562 = vmatpush2.xpose.msra.mxu0 0.0
        %563 = vmatprep.subr.mxu0 0.0
        %564 = vmatpush2.xpose.msra.mxu0 0.0
        %565 = vmatprep.mubr.f32.mxu0 0.0
        %566 = vmatmul.mubr.f32.gmra.mxu0 %v496
        %v567 = vpop.f32.mrf.mxu0
        %v568 = vadd.f32 0.0, %v567
        %v569 = vpop.f32.mrf.mxu0
        %570 = vdwg.mxu0
        %v572 = vsel %vm342, %v337, 0
        %v575 = vsel %vm342, %v321, 0
        %577 = vmatprep.subr.mxu0 0.0
        %578 = vmatpush1.xpose.msra.mxu0 0.0
        %579 = vmatprep.subr.mxu0 0.0
        %580 = vmatpush1.xpose.msra.mxu0 0.0
        %581 = vmatprep.subr.mxu0 0.0
        %582 = vmatpush1.xpose.msra.mxu0 0.0
        %583 = vmatprep.subr.mxu0 0.0
        %584 = vmatpush1.xpose.msra.mxu0 0.0
        %585 = vmatprep.subr.mxu0 0.0
        %586 = vmatpush1.xpose.msra.mxu0 0.0
        %587 = vmatprep.subr.mxu0 0.0
        %588 = vmatpush1.xpose.msra.mxu0 0.0
        %589 = vmatprep.subr.mxu0 0.0
        %590 = vmatpush1.xpose.msra.mxu0 0.0
        %591 = vmatprep.subr.mxu0 0.0
        %592 = vmatpush1.xpose.msra.mxu0 0.0
        %593 = vmatprep.subr.mxu0 0.0
        %594 = vmatpush1.xpose.msra.mxu0 0.0
        %595 = vmatprep.subr.mxu0 0.0
        %596 = vmatpush1.xpose.msra.mxu0 0.0
        %597 = vmatprep.subr.mxu0 0.0
        %598 = vmatpush1.xpose.msra.mxu0 0.0
        %599 = vmatprep.subr.mxu0 0.0
        %600 = vmatpush1.xpose.msra.mxu0 0.0
        %601 = vmatprep.subr.mxu0 0.0
        %602 = vmatpush1.xpose.msra.mxu0 0.0
        %603 = vmatprep.subr.mxu0 0.0
        %604 = vmatpush1.xpose.msra.mxu0 0.0
        %605 = vmatprep.subr.mxu0 0.0
        %606 = vmatpush1.xpose.msra.mxu0 0.0
        %607 = vmatprep.subr.mxu0 0.0
        %608 = vmatpush1.xpose.msra.mxu0 %v575
        %609 = vmatprep.subr.mxu0 0.0
        %610 = vmatpush2.xpose.msra.mxu0 0.0
        %611 = vmatprep.subr.mxu0 0.0
        %612 = vmatpush2.xpose.msra.mxu0 0.0
        %613 = vmatprep.subr.mxu0 0.0
        %614 = vmatpush2.xpose.msra.mxu0 0.0
        %615 = vmatprep.subr.mxu0 0.0
        %616 = vmatpush2.xpose.msra.mxu0 0.0
        %617 = vmatprep.subr.mxu0 0.0
        %618 = vmatpush2.xpose.msra.mxu0 0.0
        %619 = vmatprep.subr.mxu0 0.0
        %620 = vmatpush2.xpose.msra.mxu0 0.0
        %621 = vmatprep.subr.mxu0 0.0
        %622 = vmatpush2.xpose.msra.mxu0 0.0
        %623 = vmatprep.subr.mxu0 0.0
        %624 = vmatpush2.xpose.msra.mxu0 0.0
        %625 = vmatprep.subr.mxu0 0.0
        %626 = vmatpush2.xpose.msra.mxu0 0.0
        %627 = vmatprep.subr.mxu0 0.0
        %628 = vmatpush2.xpose.msra.mxu0 0.0
        %629 = vmatprep.subr.mxu0 0.0
        %630 = vmatpush2.xpose.msra.mxu0 0.0
        %631 = vmatprep.subr.mxu0 0.0
        %632 = vmatpush2.xpose.msra.mxu0 0.0
        %633 = vmatprep.subr.mxu0 0.0
        %634 = vmatpush2.xpose.msra.mxu0 0.0
        %635 = vmatprep.subr.mxu0 0.0
        %636 = vmatpush2.xpose.msra.mxu0 0.0
        %637 = vmatprep.subr.mxu0 0.0
        %638 = vmatpush2.xpose.msra.mxu0 0.0
        %639 = vmatprep.subr.mxu0 0.0
        %640 = vmatpush2.xpose.msra.mxu0 0.0
        %641 = vmatprep.mubr.f32.mxu0 0.0
        %642 = vmatmul.mubr.f32.gmra.mxu0 %v572
        %v643 = vpop.f32.mrf.mxu0
        %v644 = vadd.f32 0.0, %v643
        %v645 = vpop.f32.mrf.mxu0
        %646 = vdwg.mxu0
        %v648 = vsel %vm342, %v338, 0
        %v651 = vsel %vm342, %v322, 0
        %653 = vmatprep.subr.mxu0 0.0
        %654 = vmatpush1.xpose.msra.mxu0 0.0
        %655 = vmatprep.subr.mxu0 0.0
        %656 = vmatpush1.xpose.msra.mxu0 0.0
        %657 = vmatprep.subr.mxu0 0.0
        %658 = vmatpush1.xpose.msra.mxu0 0.0
        %659 = vmatprep.subr.mxu0 0.0
        %660 = vmatpush1.xpose.msra.mxu0 0.0
        %661 = vmatprep.subr.mxu0 0.0
        %662 = vmatpush1.xpose.msra.mxu0 0.0
        %663 = vmatprep.subr.mxu0 0.0
        %664 = vmatpush1.xpose.msra.mxu0 0.0
        %665 = vmatprep.subr.mxu0 0.0
        %666 = vmatpush1.xpose.msra.mxu0 0.0
        %667 = vmatprep.subr.mxu0 0.0
        %668 = vmatpush1.xpose.msra.mxu0 0.0
        %669 = vmatprep.subr.mxu0 0.0
        %670 = vmatpush1.xpose.msra.mxu0 0.0
        %671 = vmatprep.subr.mxu0 0.0
        %672 = vmatpush1.xpose.msra.mxu0 0.0
        %673 = vmatprep.subr.mxu0 0.0
        %674 = vmatpush1.xpose.msra.mxu0 0.0
        %675 = vmatprep.subr.mxu0 0.0
        %676 = vmatpush1.xpose.msra.mxu0 0.0
        %677 = vmatprep.subr.mxu0 0.0
        %678 = vmatpush1.xpose.msra.mxu0 0.0
        %679 = vmatprep.subr.mxu0 0.0
        %680 = vmatpush1.xpose.msra.mxu0 0.0
        %681 = vmatprep.subr.mxu0 0.0
        %682 = vmatpush1.xpose.msra.mxu0 0.0
        %683 = vmatprep.subr.mxu0 0.0
        %684 = vmatpush1.xpose.msra.mxu0 %v651
        %685 = vmatprep.subr.mxu0 0.0
        %686 = vmatpush2.xpose.msra.mxu0 0.0
        %687 = vmatprep.subr.mxu0 0.0
        %688 = vmatpush2.xpose.msra.mxu0 0.0
        %689 = vmatprep.subr.mxu0 0.0
        %690 = vmatpush2.xpose.msra.mxu0 0.0
        %691 = vmatprep.subr.mxu0 0.0
        %692 = vmatpush2.xpose.msra.mxu0 0.0
        %693 = vmatprep.subr.mxu0 0.0
        %694 = vmatpush2.xpose.msra.mxu0 0.0
        %695 = vmatprep.subr.mxu0 0.0
        %696 = vmatpush2.xpose.msra.mxu0 0.0
        %697 = vmatprep.subr.mxu0 0.0
        %698 = vmatpush2.xpose.msra.mxu0 0.0
        %699 = vmatprep.subr.mxu0 0.0
        %700 = vmatpush2.xpose.msra.mxu0 0.0
        %701 = vmatprep.subr.mxu0 0.0
        %702 = vmatpush2.xpose.msra.mxu0 0.0
        %703 = vmatprep.subr.mxu0 0.0
        %704 = vmatpush2.xpose.msra.mxu0 0.0
        %705 = vmatprep.subr.mxu0 0.0
        %706 = vmatpush2.xpose.msra.mxu0 0.0
        %707 = vmatprep.subr.mxu0 0.0
        %708 = vmatpush2.xpose.msra.mxu0 0.0
        %709 = vmatprep.subr.mxu0 0.0
        %710 = vmatpush2.xpose.msra.mxu0 0.0
        %711 = vmatprep.subr.mxu0 0.0
        %712 = vmatpush2.xpose.msra.mxu0 0.0
        %713 = vmatprep.subr.mxu0 0.0
        %714 = vmatpush2.xpose.msra.mxu0 0.0
        %715 = vmatprep.subr.mxu0 0.0
        %716 = vmatpush2.xpose.msra.mxu0 0.0
        %717 = vmatprep.mubr.f32.mxu0 0.0
        %718 = vmatmul.mubr.f32.gmra.mxu0 %v648
        %v719 = vpop.f32.mrf.mxu0
        %v720 = vadd.f32 0.0, %v719
        %v721 = vpop.f32.mrf.mxu0
        %722 = vdwg.mxu0
        %v724 = vsel %vm342, %v339, 0
        %v727 = vsel %vm342, %v323, 0
        %729 = vmatprep.subr.mxu0 0.0
        %730 = vmatpush1.xpose.msra.mxu0 0.0
        %731 = vmatprep.subr.mxu0 0.0
        %732 = vmatpush1.xpose.msra.mxu0 0.0
        %733 = vmatprep.subr.mxu0 0.0
        %734 = vmatpush1.xpose.msra.mxu0 0.0
        %735 = vmatprep.subr.mxu0 0.0
        %736 = vmatpush1.xpose.msra.mxu0 0.0
        %737 = vmatprep.subr.mxu0 0.0
        %738 = vmatpush1.xpose.msra.mxu0 0.0
        %739 = vmatprep.subr.mxu0 0.0
        %740 = vmatpush1.xpose.msra.mxu0 0.0
        %741 = vmatprep.subr.mxu0 0.0
        %742 = vmatpush1.xpose.msra.mxu0 0.0
        %743 = vmatprep.subr.mxu0 0.0
        %744 = vmatpush1.xpose.msra.mxu0 0.0
        %745 = vmatprep.subr.mxu0 0.0
        %746 = vmatpush1.xpose.msra.mxu0 0.0
        %747 = vmatprep.subr.mxu0 0.0
        %748 = vmatpush1.xpose.msra.mxu0 0.0
        %749 = vmatprep.subr.mxu0 0.0
        %750 = vmatpush1.xpose.msra.mxu0 0.0
        %751 = vmatprep.subr.mxu0 0.0
        %752 = vmatpush1.xpose.msra.mxu0 0.0
        %753 = vmatprep.subr.mxu0 0.0
        %754 = vmatpush1.xpose.msra.mxu0 0.0
        %755 = vmatprep.subr.mxu0 0.0
        %756 = vmatpush1.xpose.msra.mxu0 0.0
        %757 = vmatprep.subr.mxu0 0.0
        %758 = vmatpush1.xpose.msra.mxu0 0.0
        %759 = vmatprep.subr.mxu0 0.0
        %760 = vmatpush1.xpose.msra.mxu0 %v727
        %761 = vmatprep.subr.mxu0 0.0
        %762 = vmatpush2.xpose.msra.mxu0 0.0
        %763 = vmatprep.subr.mxu0 0.0
        %764 = vmatpush2.xpose.msra.mxu0 0.0
        %765 = vmatprep.subr.mxu0 0.0
        %766 = vmatpush2.xpose.msra.mxu0 0.0
        %767 = vmatprep.subr.mxu0 0.0
        %768 = vmatpush2.xpose.msra.mxu0 0.0
        %769 = vmatprep.subr.mxu0 0.0
        %770 = vmatpush2.xpose.msra.mxu0 0.0
        %771 = vmatprep.subr.mxu0 0.0
        %772 = vmatpush2.xpose.msra.mxu0 0.0
        %773 = vmatprep.subr.mxu0 0.0
        %774 = vmatpush2.xpose.msra.mxu0 0.0
        %775 = vmatprep.subr.mxu0 0.0
        %776 = vmatpush2.xpose.msra.mxu0 0.0
        %777 = vmatprep.subr.mxu0 0.0
        %778 = vmatpush2.xpose.msra.mxu0 0.0
        %779 = vmatprep.subr.mxu0 0.0
        %780 = vmatpush2.xpose.msra.mxu0 0.0
        %781 = vmatprep.subr.mxu0 0.0
        %782 = vmatpush2.xpose.msra.mxu0 0.0
        %783 = vmatprep.subr.mxu0 0.0
        %784 = vmatpush2.xpose.msra.mxu0 0.0
        %785 = vmatprep.subr.mxu0 0.0
        %786 = vmatpush2.xpose.msra.mxu0 0.0
        %787 = vmatprep.subr.mxu0 0.0
        %788 = vmatpush2.xpose.msra.mxu0 0.0
        %789 = vmatprep.subr.mxu0 0.0
        %790 = vmatpush2.xpose.msra.mxu0 0.0
        %791 = vmatprep.subr.mxu0 0.0
        %792 = vmatpush2.xpose.msra.mxu0 0.0
        %793 = vmatprep.mubr.f32.mxu0 0.0
        %794 = vmatmul.mubr.f32.gmra.mxu0 %v724
        %v795 = vpop.f32.mrf.mxu0
        %v796 = vadd.f32 0.0, %v795
        %v797 = vpop.f32.mrf.mxu0
        %798 = vdwg.mxu0
        %v800 = vsel %vm342, %v340, 0
        %v803 = vsel %vm342, %v324, 0
        %805 = vmatprep.subr.mxu0 0.0
        %806 = vmatpush1.xpose.msra.mxu0 0.0
        %807 = vmatprep.subr.mxu0 0.0
        %808 = vmatpush1.xpose.msra.mxu0 0.0
        %809 = vmatprep.subr.mxu0 0.0
        %810 = vmatpush1.xpose.msra.mxu0 0.0
        %811 = vmatprep.subr.mxu0 0.0
        %812 = vmatpush1.xpose.msra.mxu0 0.0
        %813 = vmatprep.subr.mxu0 0.0
        %814 = vmatpush1.xpose.msra.mxu0 0.0
        %815 = vmatprep.subr.mxu0 0.0
        %816 = vmatpush1.xpose.msra.mxu0 0.0
        %817 = vmatprep.subr.mxu0 0.0
        %818 = vmatpush1.xpose.msra.mxu0 0.0
        %819 = vmatprep.subr.mxu0 0.0
        %820 = vmatpush1.xpose.msra.mxu0 0.0
        %821 = vmatprep.subr.mxu0 0.0
        %822 = vmatpush1.xpose.msra.mxu0 0.0
        %823 = vmatprep.subr.mxu0 0.0
        %824 = vmatpush1.xpose.msra.mxu0 0.0
        %825 = vmatprep.subr.mxu0 0.0
        %826 = vmatpush1.xpose.msra.mxu0 0.0
        %827 = vmatprep.subr.mxu0 0.0
        %828 = vmatpush1.xpose.msra.mxu0 0.0
        %829 = vmatprep.subr.mxu0 0.0
        %830 = vmatpush1.xpose.msra.mxu0 0.0
        %831 = vmatprep.subr.mxu0 0.0
        %832 = vmatpush1.xpose.msra.mxu0 0.0
        %833 = vmatprep.subr.mxu0 0.0
        %834 = vmatpush1.xpose.msra.mxu0 0.0
        %835 = vmatprep.subr.mxu0 0.0
        %836 = vmatpush1.xpose.msra.mxu0 %v803
        %837 = vmatprep.subr.mxu0 0.0
        %838 = vmatpush2.xpose.msra.mxu0 0.0
        %839 = vmatprep.subr.mxu0 0.0
        %840 = vmatpush2.xpose.msra.mxu0 0.0
        %841 = vmatprep.subr.mxu0 0.0
        %842 = vmatpush2.xpose.msra.mxu0 0.0
        %843 = vmatprep.subr.mxu0 0.0
        %844 = vmatpush2.xpose.msra.mxu0 0.0
        %845 = vmatprep.subr.mxu0 0.0
        %846 = vmatpush2.xpose.msra.mxu0 0.0
        %847 = vmatprep.subr.mxu0 0.0
        %848 = vmatpush2.xpose.msra.mxu0 0.0
        %849 = vmatprep.subr.mxu0 0.0
        %850 = vmatpush2.xpose.msra.mxu0 0.0
        %851 = vmatprep.subr.mxu0 0.0
        %852 = vmatpush2.xpose.msra.mxu0 0.0
        %853 = vmatprep.subr.mxu0 0.0
        %854 = vmatpush2.xpose.msra.mxu0 0.0
        %855 = vmatprep.subr.mxu0 0.0
        %856 = vmatpush2.xpose.msra.mxu0 0.0
        %857 = vmatprep.subr.mxu0 0.0
        %858 = vmatpush2.xpose.msra.mxu0 0.0
        %859 = vmatprep.subr.mxu0 0.0
        %860 = vmatpush2.xpose.msra.mxu0 0.0
        %861 = vmatprep.subr.mxu0 0.0
        %862 = vmatpush2.xpose.msra.mxu0 0.0
        %863 = vmatprep.subr.mxu0 0.0
        %864 = vmatpush2.xpose.msra.mxu0 0.0
        %865 = vmatprep.subr.mxu0 0.0
        %866 = vmatpush2.xpose.msra.mxu0 0.0
        %867 = vmatprep.subr.mxu0 0.0
        %868 = vmatpush2.xpose.msra.mxu0 0.0
        %869 = vmatprep.mubr.f32.mxu0 0.0
        %870 = vmatmul.mubr.f32.gmra.mxu0 %v800
        %v871 = vpop.f32.mrf.mxu0
        %v872 = vadd.f32 0.0, %v871
        %v873 = vpop.f32.mrf.mxu0
        %874 = vdwg.mxu0
        %v876 = vsel %vm342, %v341, 0
        %v879 = vsel %vm342, %v325, 0
        %881 = vmatprep.subr.mxu0 0.0
        %882 = vmatpush1.xpose.msra.mxu0 0.0
        %883 = vmatprep.subr.mxu0 0.0
        %884 = vmatpush1.xpose.msra.mxu0 0.0
        %885 = vmatprep.subr.mxu0 0.0
        %886 = vmatpush1.xpose.msra.mxu0 0.0
        %887 = vmatprep.subr.mxu0 0.0
        %888 = vmatpush1.xpose.msra.mxu0 0.0
        %889 = vmatprep.subr.mxu0 0.0
        %890 = vmatpush1.xpose.msra.mxu0 0.0
        %891 = vmatprep.subr.mxu0 0.0
        %892 = vmatpush1.xpose.msra.mxu0 0.0
        %893 = vmatprep.subr.mxu0 0.0
        %894 = vmatpush1.xpose.msra.mxu0 0.0
        %895 = vmatprep.subr.mxu0 0.0
        %896 = vmatpush1.xpose.msra.mxu0 0.0
        %897 = vmatprep.subr.mxu0 0.0
        %898 = vmatpush1.xpose.msra.mxu0 0.0
        %899 = vmatprep.subr.mxu0 0.0
        %900 = vmatpush1.xpose.msra.mxu0 0.0
        %901 = vmatprep.subr.mxu0 0.0
        %902 = vmatpush1.xpose.msra.mxu0 0.0
        %903 = vmatprep.subr.mxu0 0.0
        %904 = vmatpush1.xpose.msra.mxu0 0.0
        %905 = vmatprep.subr.mxu0 0.0
        %906 = vmatpush1.xpose.msra.mxu0 0.0
        %907 = vmatprep.subr.mxu0 0.0
        %908 = vmatpush1.xpose.msra.mxu0 0.0
        %909 = vmatprep.subr.mxu0 0.0
        %910 = vmatpush1.xpose.msra.mxu0 0.0
        %911 = vmatprep.subr.mxu0 0.0
        %912 = vmatpush1.xpose.msra.mxu0 %v879
        %913 = vmatprep.subr.mxu0 0.0
        %914 = vmatpush2.xpose.msra.mxu0 0.0
        %915 = vmatprep.subr.mxu0 0.0
        %916 = vmatpush2.xpose.msra.mxu0 0.0
        %917 = vmatprep.subr.mxu0 0.0
        %918 = vmatpush2.xpose.msra.mxu0 0.0
        %919 = vmatprep.subr.mxu0 0.0
        %920 = vmatpush2.xpose.msra.mxu0 0.0
        %921 = vmatprep.subr.mxu0 0.0
        %922 = vmatpush2.xpose.msra.mxu0 0.0
        %923 = vmatprep.subr.mxu0 0.0
        %924 = vmatpush2.xpose.msra.mxu0 0.0
        %925 = vmatprep.subr.mxu0 0.0
        %926 = vmatpush2.xpose.msra.mxu0 0.0
        %927 = vmatprep.subr.mxu0 0.0
        %928 = vmatpush2.xpose.msra.mxu0 0.0
        %929 = vmatprep.subr.mxu0 0.0
        %930 = vmatpush2.xpose.msra.mxu0 0.0
        %931 = vmatprep.subr.mxu0 0.0
        %932 = vmatpush2.xpose.msra.mxu0 0.0
        %933 = vmatprep.subr.mxu0 0.0
        %934 = vmatpush2.xpose.msra.mxu0 0.0
        %935 = vmatprep.subr.mxu0 0.0
        %936 = vmatpush2.xpose.msra.mxu0 0.0
        %937 = vmatprep.subr.mxu0 0.0
        %938 = vmatpush2.xpose.msra.mxu0 0.0
        %939 = vmatprep.subr.mxu0 0.0
        %940 = vmatpush2.xpose.msra.mxu0 0.0
        %941 = vmatprep.subr.mxu0 0.0
        %942 = vmatpush2.xpose.msra.mxu0 0.0
        %943 = vmatprep.subr.mxu0 0.0
        %944 = vmatpush2.xpose.msra.mxu0 0.0
        %945 = vmatprep.mubr.f32.mxu0 0.0
        %946 = vmatmul.mubr.f32.gmra.mxu0 %v876
        %v947 = vpop.f32.mrf.mxu0
        %v948 = vadd.f32 0.0, %v947
        %v949 = vpop.f32.mrf.mxu0
        %950 = vdwg.mxu0
        %vm951 = vcmask 64512
        %v952 = vsel %vm951, %v416, -inf
        %953 = vmax.xlane.f32.xlu0 %v952
        %v954 = vpop.xlane.xlu0 %953
        %v955 = vsel %vm951, %v492, -inf
        %956 = vmax.xlane.f32.xlu0 %v955
        %v957 = vpop.xlane.xlu0 %956
        %v958 = vsel %vm951, %v568, -inf
        %959 = vmax.xlane.f32.xlu0 %v958
        %v960 = vpop.xlane.xlu0 %959
        %v961 = vsel %vm951, %v644, -inf
        %962 = vmax.xlane.f32.xlu0 %v961
        %v963 = vpop.xlane.xlu0 %962
        %v964 = vsel %vm951, %v720, -inf
        %965 = vmax.xlane.f32.xlu0 %v964
        %v966 = vpop.xlane.xlu0 %965
        %v967 = vsel %vm951, %v796, -inf
        %968 = vmax.xlane.f32.xlu0 %v967
        %v969 = vpop.xlane.xlu0 %968
        %v970 = vsel %vm951, %v872, -inf
        %971 = vmax.xlane.f32.xlu0 %v970
        %v972 = vpop.xlane.xlu0 %971
        %v973 = vsel %vm951, %v948, -inf
        %974 = vmax.xlane.f32.xlu0 %v973
        %v975 = vpop.xlane.xlu0 %974
        %v976 = vsub.f32 %v416, %v954
        %v977 = vsub.f32 %v492, %v957
        %v978 = vsub.f32 %v568, %v960
        %v979 = vsub.f32 %v644, %v963
        %v980 = vsub.f32 %v720, %v966
        %v981 = vsub.f32 %v796, %v969
        %v982 = vsub.f32 %v872, %v972
        %v983 = vsub.f32 %v948, %v975
        %v984 = vmul.f32 %v976, 1.442695
        %v985 = vpow.pop %v984
        %v986 = vmul.f32 %v977, 1.442695
        %v987 = vpow.pop %v986
        %v988 = vmul.f32 %v978, 1.442695
        %v989 = vpow.pop %v988
        %v990 = vmul.f32 %v979, 1.442695
        %v991 = vpow.pop %v990
        %v992 = vmul.f32 %v980, 1.442695
        %v993 = vpow.pop %v992
        %v994 = vmul.f32 %v981, 1.442695
        %v995 = vpow.pop %v994
        %v996 = vmul.f32 %v982, 1.442695
        %v997 = vpow.pop %v996
        %v998 = vmul.f32 %v983, 1.442695
        %v999 = vpow.pop %v998
        %v1000 = vsel %vm951, %v985, 0.0
        %1001 = vadd.xlane.f32.xlu0 %v1000
        %v1002 = vpop.xlane.xlu0 %1001
        %v1003 = vsel %vm951, %v987, 0.0
        %1004 = vadd.xlane.f32.xlu0 %v1003
        %v1005 = vpop.xlane.xlu0 %1004
        %v1006 = vsel %vm951, %v989, 0.0
        %1007 = vadd.xlane.f32.xlu0 %v1006
        %v1008 = vpop.xlane.xlu0 %1007
        %v1009 = vsel %vm951, %v991, 0.0
        %1010 = vadd.xlane.f32.xlu0 %v1009
        %v1011 = vpop.xlane.xlu0 %1010
        %v1012 = vsel %vm951, %v993, 0.0
        %1013 = vadd.xlane.f32.xlu0 %v1012
        %v1014 = vpop.xlane.xlu0 %1013
        %v1015 = vsel %vm951, %v995, 0.0
        %1016 = vadd.xlane.f32.xlu0 %v1015
        %v1017 = vpop.xlane.xlu0 %1016
        %v1018 = vsel %vm951, %v997, 0.0
        %1019 = vadd.xlane.f32.xlu0 %v1018
        %v1020 = vpop.xlane.xlu0 %1019
        %v1021 = vsel %vm951, %v999, 0.0
        %1022 = vadd.xlane.f32.xlu0 %v1021
        %v1023 = vpop.xlane.xlu0 %1022
        %v1024 = vrcp.pop %v1002
        %v1025 = vrcp.pop %v1005
        %v1026 = vrcp.pop %v1008
        %v1027 = vrcp.pop %v1011
        %v1028 = vrcp.pop %v1014
        %v1029 = vrcp.pop %v1017
        %v1030 = vrcp.pop %v1020
        %v1031 = vrcp.pop %v1023
        %v1032 = vmul.f32 %v985, %v1024
        %v1033 = vmul.f32 %v987, %v1025
        %v1034 = vmul.f32 %v989, %v1026
        %v1035 = vmul.f32 %v991, %v1027
        %v1036 = vmul.f32 %v993, %v1028
        %v1037 = vmul.f32 %v995, %v1029
        %v1038 = vmul.f32 %v997, %v1030
        %v1039 = vmul.f32 %v999, %v1031
        %1040 = vst.msk [vmem:[%s308] sm:$0xff] %vm951, %v1032
        %1041 = vst.msk [vmem:[%s308 + $0x8] sm:$0xff] %vm951, %v1033
        %1042 = vst.msk [vmem:[%s308 + $0x10] sm:$0xff] %vm951, %v1034
        %1043 = vst.msk [vmem:[%s308 + $0x18] sm:$0xff] %vm951, %v1035
        %1044 = vst.msk [vmem:[%s308 + $0x20] sm:$0xff] %vm951, %v1036
        %1045 = vst.msk [vmem:[%s308 + $0x28] sm:$0xff] %vm951, %v1037
        %1046 = vst.msk [vmem:[%s308 + $0x30] sm:$0xff] %vm951, %v1038
        %1047 = vst.msk [vmem:[%s308 + $0x38] sm:$0xff] %vm951, %v1039
        %v1049 = vsel %vm951, %v1032, 0
        %1051 = vmatprep.subr.mxu0 0.0
        %1052 = vmatpush1.msra.mxu0 0.0
        %1053 = vmatprep.subr.mxu0 0.0
        %1054 = vmatpush1.msra.mxu0 0.0
        %1055 = vmatprep.subr.mxu0 0.0
        %1056 = vmatpush1.msra.mxu0 0.0
        %1057 = vmatprep.subr.mxu0 0.0
        %1058 = vmatpush1.msra.mxu0 0.0
        %1059 = vmatprep.subr.mxu0 0.0
        %1060 = vmatpush1.msra.mxu0 0.0
        %1061 = vmatprep.subr.mxu0 0.0
        %1062 = vmatpush1.msra.mxu0 0.0
        %1063 = vmatprep.subr.mxu0 0.0
        %1064 = vmatpush1.msra.mxu0 0.0
        %1065 = vmatprep.subr.mxu0 0.0
        %1066 = vmatpush1.msra.mxu0 0.0
        %1067 = vmatprep.subr.mxu0 0.0
        %1068 = vmatpush1.msra.mxu0 0.0
        %1069 = vmatprep.subr.mxu0 0.0
        %1070 = vmatpush1.msra.mxu0 0.0
        %1071 = vmatprep.subr.mxu0 0.0
        %1072 = vmatpush1.msra.mxu0 0.0
        %1073 = vmatprep.subr.mxu0 0.0
        %1074 = vmatpush1.msra.mxu0 0.0
        %1075 = vmatprep.subr.mxu0 0.0
        %1076 = vmatpush1.msra.mxu0 0.0
        %1077 = vmatprep.subr.mxu0 0.0
        %1078 = vmatpush1.msra.mxu0 0.0
        %1079 = vmatprep.subr.mxu0 0.0
        %1080 = vmatpush1.msra.mxu0 0.0
        %1081 = vmatprep.subr.mxu0 0.0
        %1082 = vmatpush1.msra.mxu0 %v326
        %1083 = vmatprep.subr.mxu0 0.0
        %1084 = vmatpush2.msra.mxu0 0.0
        %1085 = vmatprep.subr.mxu0 0.0
        %1086 = vmatpush2.msra.mxu0 0.0
        %1087 = vmatprep.subr.mxu0 0.0
        %1088 = vmatpush2.msra.mxu0 0.0
        %1089 = vmatprep.subr.mxu0 0.0
        %1090 = vmatpush2.msra.mxu0 0.0
        %1091 = vmatprep.subr.mxu0 0.0
        %1092 = vmatpush2.msra.mxu0 0.0
        %1093 = vmatprep.subr.mxu0 0.0
        %1094 = vmatpush2.msra.mxu0 0.0
        %1095 = vmatprep.subr.mxu0 0.0
        %1096 = vmatpush2.msra.mxu0 0.0
        %1097 = vmatprep.subr.mxu0 0.0
        %1098 = vmatpush2.msra.mxu0 0.0
        %1099 = vmatprep.subr.mxu0 0.0
        %1100 = vmatpush2.msra.mxu0 0.0
        %1101 = vmatprep.subr.mxu0 0.0
        %1102 = vmatpush2.msra.mxu0 0.0
        %1103 = vmatprep.subr.mxu0 0.0
        %1104 = vmatpush2.msra.mxu0 0.0
        %1105 = vmatprep.subr.mxu0 0.0
        %1106 = vmatpush2.msra.mxu0 0.0
        %1107 = vmatprep.subr.mxu0 0.0
        %1108 = vmatpush2.msra.mxu0 0.0
        %1109 = vmatprep.subr.mxu0 0.0
        %1110 = vmatpush2.msra.mxu0 0.0
        %1111 = vmatprep.subr.mxu0 0.0
        %1112 = vmatpush2.msra.mxu0 0.0
        %1113 = vmatprep.subr.mxu0 0.0
        %1114 = vmatpush2.msra.mxu0 0.0
        %1115 = vmatprep.mubr.f32.mxu0 0.0
        %1116 = vmatmul.mubr.f32.gmra.mxu0 %v1049
        %v1117 = vpop.f32.mrf.mxu0
        %v1118 = vadd.f32 0.0, %v1117
        %v1119 = vpop.f32.mrf.mxu0
        %1120 = vdwg.mxu0
        %v1122 = vsel %vm951, %v1033, 0
        %1124 = vmatprep.subr.mxu0 0.0
        %1125 = vmatpush1.msra.mxu0 0.0
        %1126 = vmatprep.subr.mxu0 0.0
        %1127 = vmatpush1.msra.mxu0 0.0
        %1128 = vmatprep.subr.mxu0 0.0
        %1129 = vmatpush1.msra.mxu0 0.0
        %1130 = vmatprep.subr.mxu0 0.0
        %1131 = vmatpush1.msra.mxu0 0.0
        %1132 = vmatprep.subr.mxu0 0.0
        %1133 = vmatpush1.msra.mxu0 0.0
        %1134 = vmatprep.subr.mxu0 0.0
        %1135 = vmatpush1.msra.mxu0 0.0
        %1136 = vmatprep.subr.mxu0 0.0
        %1137 = vmatpush1.msra.mxu0 0.0
        %1138 = vmatprep.subr.mxu0 0.0
        %1139 = vmatpush1.msra.mxu0 0.0
        %1140 = vmatprep.subr.mxu0 0.0
        %1141 = vmatpush1.msra.mxu0 0.0
        %1142 = vmatprep.subr.mxu0 0.0
        %1143 = vmatpush1.msra.mxu0 0.0
        %1144 = vmatprep.subr.mxu0 0.0
        %1145 = vmatpush1.msra.mxu0 0.0
        %1146 = vmatprep.subr.mxu0 0.0
        %1147 = vmatpush1.msra.mxu0 0.0
        %1148 = vmatprep.subr.mxu0 0.0
        %1149 = vmatpush1.msra.mxu0 0.0
        %1150 = vmatprep.subr.mxu0 0.0
        %1151 = vmatpush1.msra.mxu0 0.0
        %1152 = vmatprep.subr.mxu0 0.0
        %1153 = vmatpush1.msra.mxu0 0.0
        %1154 = vmatprep.subr.mxu0 0.0
        %1155 = vmatpush1.msra.mxu0 %v327
        %1156 = vmatprep.subr.mxu0 0.0
        %1157 = vmatpush2.msra.mxu0 0.0
        %1158 = vmatprep.subr.mxu0 0.0
        %1159 = vmatpush2.msra.mxu0 0.0
        %1160 = vmatprep.subr.mxu0 0.0
        %1161 = vmatpush2.msra.mxu0 0.0
        %1162 = vmatprep.subr.mxu0 0.0
        %1163 = vmatpush2.msra.mxu0 0.0
        %1164 = vmatprep.subr.mxu0 0.0
        %1165 = vmatpush2.msra.mxu0 0.0
        %1166 = vmatprep.subr.mxu0 0.0
        %1167 = vmatpush2.msra.mxu0 0.0
        %1168 = vmatprep.subr.mxu0 0.0
        %1169 = vmatpush2.msra.mxu0 0.0
        %1170 = vmatprep.subr.mxu0 0.0
        %1171 = vmatpush2.msra.mxu0 0.0
        %1172 = vmatprep.subr.mxu0 0.0
        %1173 = vmatpush2.msra.mxu0 0.0
        %1174 = vmatprep.subr.mxu0 0.0
        %1175 = vmatpush2.msra.mxu0 0.0
        %1176 = vmatprep.subr.mxu0 0.0
        %1177 = vmatpush2.msra.mxu0 0.0
        %1178 = vmatprep.subr.mxu0 0.0
        %1179 = vmatpush2.msra.mxu0 0.0
        %1180 = vmatprep.subr.mxu0 0.0
        %1181 = vmatpush2.msra.mxu0 0.0
        %1182 = vmatprep.subr.mxu0 0.0
        %1183 = vmatpush2.msra.mxu0 0.0
        %1184 = vmatprep.subr.mxu0 0.0
        %1185 = vmatpush2.msra.mxu0 0.0
        %1186 = vmatprep.subr.mxu0 0.0
        %1187 = vmatpush2.msra.mxu0 0.0
        %1188 = vmatprep.mubr.f32.mxu0 0.0
        %1189 = vmatmul.mubr.f32.gmra.mxu0 %v1122
        %v1190 = vpop.f32.mrf.mxu0
        %v1191 = vadd.f32 0.0, %v1190
        %v1192 = vpop.f32.mrf.mxu0
        %1193 = vdwg.mxu0
        %v1195 = vsel %vm951, %v1034, 0
        %1197 = vmatprep.subr.mxu0 0.0
        %1198 = vmatpush1.msra.mxu0 0.0
        %1199 = vmatprep.subr.mxu0 0.0
        %1200 = vmatpush1.msra.mxu0 0.0
        %1201 = vmatprep.subr.mxu0 0.0
        %1202 = vmatpush1.msra.mxu0 0.0
        %1203 = vmatprep.subr.mxu0 0.0
        %1204 = vmatpush1.msra.mxu0 0.0
        %1205 = vmatprep.subr.mxu0 0.0
        %1206 = vmatpush1.msra.mxu0 0.0
        %1207 = vmatprep.subr.mxu0 0.0
        %1208 = vmatpush1.msra.mxu0 0.0
        %1209 = vmatprep.subr.mxu0 0.0
        %1210 = vmatpush1.msra.mxu0 0.0
        %1211 = vmatprep.subr.mxu0 0.0
        %1212 = vmatpush1.msra.mxu0 0.0
        %1213 = vmatprep.subr.mxu0 0.0
        %1214 = vmatpush1.msra.mxu0 0.0
        %1215 = vmatprep.subr.mxu0 0.0
        %1216 = vmatpush1.msra.mxu0 0.0
        %1217 = vmatprep.subr.mxu0 0.0
        %1218 = vmatpush1.msra.mxu0 0.0
        %1219 = vmatprep.subr.mxu0 0.0
        %1220 = vmatpush1.msra.mxu0 0.0
        %1221 = vmatprep.subr.mxu0 0.0
        %1222 = vmatpush1.msra.mxu0 0.0
        %1223 = vmatprep.subr.mxu0 0.0
        %1224 = vmatpush1.msra.mxu0 0.0
        %1225 = vmatprep.subr.mxu0 0.0
        %1226 = vmatpush1.msra.mxu0 0.0
        %1227 = vmatprep.subr.mxu0 0.0
        %1228 = vmatpush1.msra.mxu0 %v328
        %1229 = vmatprep.subr.mxu0 0.0
        %1230 = vmatpush2.msra.mxu0 0.0
        %1231 = vmatprep.subr.mxu0 0.0
        %1232 = vmatpush2.msra.mxu0 0.0
        %1233 = vmatprep.subr.mxu0 0.0
        %1234 = vmatpush2.msra.mxu0 0.0
        %1235 = vmatprep.subr.mxu0 0.0
        %1236 = vmatpush2.msra.mxu0 0.0
        %1237 = vmatprep.subr.mxu0 0.0
        %1238 = vmatpush2.msra.mxu0 0.0
        %1239 = vmatprep.subr.mxu0 0.0
        %1240 = vmatpush2.msra.mxu0 0.0
        %1241 = vmatprep.subr.mxu0 0.0
        %1242 = vmatpush2.msra.mxu0 0.0
        %1243 = vmatprep.subr.mxu0 0.0
        %1244 = vmatpush2.msra.mxu0 0.0
        %1245 = vmatprep.subr.mxu0 0.0
        %1246 = vmatpush2.msra.mxu0 0.0
        %1247 = vmatprep.subr.mxu0 0.0
        %1248 = vmatpush2.msra.mxu0 0.0
        %1249 = vmatprep.subr.mxu0 0.0
        %1250 = vmatpush2.msra.mxu0 0.0
        %1251 = vmatprep.subr.mxu0 0.0
        %1252 = vmatpush2.msra.mxu0 0.0
        %1253 = vmatprep.subr.mxu0 0.0
        %1254 = vmatpush2.msra.mxu0 0.0
        %1255 = vmatprep.subr.mxu0 0.0
        %1256 = vmatpush2.msra.mxu0 0.0
        %1257 = vmatprep.subr.mxu0 0.0
        %1258 = vmatpush2.msra.mxu0 0.0
        %1259 = vmatprep.subr.mxu0 0.0
        %1260 = vmatpush2.msra.mxu0 0.0
        %1261 = vmatprep.mubr.f32.mxu0 0.0
        %1262 = vmatmul.mubr.f32.gmra.mxu0 %v1195
        %v1263 = vpop.f32.mrf.mxu0
        %v1264 = vadd.f32 0.0, %v1263
        %v1265 = vpop.f32.mrf.mxu0
        %1266 = vdwg.mxu0
        %v1268 = vsel %vm951, %v1035, 0
        %1270 = vmatprep.subr.mxu0 0.0
        %1271 = vmatpush1.msra.mxu0 0.0
        %1272 = vmatprep.subr.mxu0 0.0
        %1273 = vmatpush1.msra.mxu0 0.0
        %1274 = vmatprep.subr.mxu0 0.0
        %1275 = vmatpush1.msra.mxu0 0.0
        %1276 = vmatprep.subr.mxu0 0.0
        %1277 = vmatpush1.msra.mxu0 0.0
        %1278 = vmatprep.subr.mxu0 0.0
        %1279 = vmatpush1.msra.mxu0 0.0
        %1280 = vmatprep.subr.mxu0 0.0
        %1281 = vmatpush1.msra.mxu0 0.0
        %1282 = vmatprep.subr.mxu0 0.0
        %1283 = vmatpush1.msra.mxu0 0.0
        %1284 = vmatprep.subr.mxu0 0.0
        %1285 = vmatpush1.msra.mxu0 0.0
        %1286 = vmatprep.subr.mxu0 0.0
        %1287 = vmatpush1.msra.mxu0 0.0
        %1288 = vmatprep.subr.mxu0 0.0
        %1289 = vmatpush1.msra.mxu0 0.0
        %1290 = vmatprep.subr.mxu0 0.0
        %1291 = vmatpush1.msra.mxu0 0.0
        %1292 = vmatprep.subr.mxu0 0.0
        %1293 = vmatpush1.msra.mxu0 0.0
        %1294 = vmatprep.subr.mxu0 0.0
        %1295 = vmatpush1.msra.mxu0 0.0
        %1296 = vmatprep.subr.mxu0 0.0
        %1297 = vmatpush1.msra.mxu0 0.0
        %1298 = vmatprep.subr.mxu0 0.0
        %1299 = vmatpush1.msra.mxu0 0.0
        %1300 = vmatprep.subr.mxu0 0.0
        %1301 = vmatpush1.msra.mxu0 %v329
        %1302 = vmatprep.subr.mxu0 0.0
        %1303 = vmatpush2.msra.mxu0 0.0
        %1304 = vmatprep.subr.mxu0 0.0
        %1305 = vmatpush2.msra.mxu0 0.0
        %1306 = vmatprep.subr.mxu0 0.0
        %1307 = vmatpush2.msra.mxu0 0.0
        %1308 = vmatprep.subr.mxu0 0.0
        %1309 = vmatpush2.msra.mxu0 0.0
        %1310 = vmatprep.subr.mxu0 0.0
        %1311 = vmatpush2.msra.mxu0 0.0
        %1312 = vmatprep.subr.mxu0 0.0
        %1313 = vmatpush2.msra.mxu0 0.0
        %1314 = vmatprep.subr.mxu0 0.0
        %1315 = vmatpush2.msra.mxu0 0.0
        %1316 = vmatprep.subr.mxu0 0.0
        %1317 = vmatpush2.msra.mxu0 0.0
        %1318 = vmatprep.subr.mxu0 0.0
        %1319 = vmatpush2.msra.mxu0 0.0
        %1320 = vmatprep.subr.mxu0 0.0
        %1321 = vmatpush2.msra.mxu0 0.0
        %1322 = vmatprep.subr.mxu0 0.0
        %1323 = vmatpush2.msra.mxu0 0.0
        %1324 = vmatprep.subr.mxu0 0.0
        %1325 = vmatpush2.msra.mxu0 0.0
        %1326 = vmatprep.subr.mxu0 0.0
        %1327 = vmatpush2.msra.mxu0 0.0
        %1328 = vmatprep.subr.mxu0 0.0
        %1329 = vmatpush2.msra.mxu0 0.0
        %1330 = vmatprep.subr.mxu0 0.0
        %1331 = vmatpush2.msra.mxu0 0.0
        %1332 = vmatprep.subr.mxu0 0.0
        %1333 = vmatpush2.msra.mxu0 0.0
        %1334 = vmatprep.mubr.f32.mxu0 0.0
        %1335 = vmatmul.mubr.f32.gmra.mxu0 %v1268
        %v1336 = vpop.f32.mrf.mxu0
        %v1337 = vadd.f32 0.0, %v1336
        %v1338 = vpop.f32.mrf.mxu0
        %1339 = vdwg.mxu0
        %v1341 = vsel %vm951, %v1036, 0
        %1343 = vmatprep.subr.mxu0 0.0
        %1344 = vmatpush1.msra.mxu0 0.0
        %1345 = vmatprep.subr.mxu0 0.0
        %1346 = vmatpush1.msra.mxu0 0.0
        %1347 = vmatprep.subr.mxu0 0.0
        %1348 = vmatpush1.msra.mxu0 0.0
        %1349 = vmatprep.subr.mxu0 0.0
        %1350 = vmatpush1.msra.mxu0 0.0
        %1351 = vmatprep.subr.mxu0 0.0
        %1352 = vmatpush1.msra.mxu0 0.0
        %1353 = vmatprep.subr.mxu0 0.0
        %1354 = vmatpush1.msra.mxu0 0.0
        %1355 = vmatprep.subr.mxu0 0.0
        %1356 = vmatpush1.msra.mxu0 0.0
        %1357 = vmatprep.subr.mxu0 0.0
        %1358 = vmatpush1.msra.mxu0 0.0
        %1359 = vmatprep.subr.mxu0 0.0
        %1360 = vmatpush1.msra.mxu0 0.0
        %1361 = vmatprep.subr.mxu0 0.0
        %1362 = vmatpush1.msra.mxu0 0.0
        %1363 = vmatprep.subr.mxu0 0.0
        %1364 = vmatpush1.msra.mxu0 0.0
        %1365 = vmatprep.subr.mxu0 0.0
        %1366 = vmatpush1.msra.mxu0 0.0
        %1367 = vmatprep.subr.mxu0 0.0
        %1368 = vmatpush1.msra.mxu0 0.0
        %1369 = vmatprep.subr.mxu0 0.0
        %1370 = vmatpush1.msra.mxu0 0.0
        %1371 = vmatprep.subr.mxu0 0.0
        %1372 = vmatpush1.msra.mxu0 0.0
        %1373 = vmatprep.subr.mxu0 0.0
        %1374 = vmatpush1.msra.mxu0 %v330
        %1375 = vmatprep.subr.mxu0 0.0
        %1376 = vmatpush2.msra.mxu0 0.0
        %1377 = vmatprep.subr.mxu0 0.0
        %1378 = vmatpush2.msra.mxu0 0.0
        %1379 = vmatprep.subr.mxu0 0.0
        %1380 = vmatpush2.msra.mxu0 0.0
        %1381 = vmatprep.subr.mxu0 0.0
        %1382 = vmatpush2.msra.mxu0 0.0
        %1383 = vmatprep.subr.mxu0 0.0
        %1384 = vmatpush2.msra.mxu0 0.0
        %1385 = vmatprep.subr.mxu0 0.0
        %1386 = vmatpush2.msra.mxu0 0.0
        %1387 = vmatprep.subr.mxu0 0.0
        %1388 = vmatpush2.msra.mxu0 0.0
        %1389 = vmatprep.subr.mxu0 0.0
        %1390 = vmatpush2.msra.mxu0 0.0
        %1391 = vmatprep.subr.mxu0 0.0
        %1392 = vmatpush2.msra.mxu0 0.0
        %1393 = vmatprep.subr.mxu0 0.0
        %1394 = vmatpush2.msra.mxu0 0.0
        %1395 = vmatprep.subr.mxu0 0.0
        %1396 = vmatpush2.msra.mxu0 0.0
        %1397 = vmatprep.subr.mxu0 0.0
        %1398 = vmatpush2.msra.mxu0 0.0
        %1399 = vmatprep.subr.mxu0 0.0
        %1400 = vmatpush2.msra.mxu0 0.0
        %1401 = vmatprep.subr.mxu0 0.0
        %1402 = vmatpush2.msra.mxu0 0.0
        %1403 = vmatprep.subr.mxu0 0.0
        %1404 = vmatpush2.msra.mxu0 0.0
        %1405 = vmatprep.subr.mxu0 0.0
        %1406 = vmatpush2.msra.mxu0 0.0
        %1407 = vmatprep.mubr.f32.mxu0 0.0
        %1408 = vmatmul.mubr.f32.gmra.mxu0 %v1341
        %v1409 = vpop.f32.mrf.mxu0
        %v1410 = vadd.f32 0.0, %v1409
        %v1411 = vpop.f32.mrf.mxu0
        %1412 = vdwg.mxu0
        %v1414 = vsel %vm951, %v1037, 0
        %1416 = vmatprep.subr.mxu0 0.0
        %1417 = vmatpush1.msra.mxu0 0.0
        %1418 = vmatprep.subr.mxu0 0.0
        %1419 = vmatpush1.msra.mxu0 0.0
        %1420 = vmatprep.subr.mxu0 0.0
        %1421 = vmatpush1.msra.mxu0 0.0
        %1422 = vmatprep.subr.mxu0 0.0
        %1423 = vmatpush1.msra.mxu0 0.0
        %1424 = vmatprep.subr.mxu0 0.0
        %1425 = vmatpush1.msra.mxu0 0.0
        %1426 = vmatprep.subr.mxu0 0.0
        %1427 = vmatpush1.msra.mxu0 0.0
        %1428 = vmatprep.subr.mxu0 0.0
        %1429 = vmatpush1.msra.mxu0 0.0
        %1430 = vmatprep.subr.mxu0 0.0
        %1431 = vmatpush1.msra.mxu0 0.0
        %1432 = vmatprep.subr.mxu0 0.0
        %1433 = vmatpush1.msra.mxu0 0.0
        %1434 = vmatprep.subr.mxu0 0.0
        %1435 = vmatpush1.msra.mxu0 0.0
        %1436 = vmatprep.subr.mxu0 0.0
        %1437 = vmatpush1.msra.mxu0 0.0
        %1438 = vmatprep.subr.mxu0 0.0
        %1439 = vmatpush1.msra.mxu0 0.0
        %1440 = vmatprep.subr.mxu0 0.0
        %1441 = vmatpush1.msra.mxu0 0.0
        %1442 = vmatprep.subr.mxu0 0.0
        %1443 = vmatpush1.msra.mxu0 0.0
        %1444 = vmatprep.subr.mxu0 0.0
        %1445 = vmatpush1.msra.mxu0 0.0
        %1446 = vmatprep.subr.mxu0 0.0
        %1447 = vmatpush1.msra.mxu0 %v331
        %1448 = vmatprep.subr.mxu0 0.0
        %1449 = vmatpush2.msra.mxu0 0.0
        %1450 = vmatprep.subr.mxu0 0.0
        %1451 = vmatpush2.msra.mxu0 0.0
        %1452 = vmatprep.subr.mxu0 0.0
        %1453 = vmatpush2.msra.mxu0 0.0
        %1454 = vmatprep.subr.mxu0 0.0
        %1455 = vmatpush2.msra.mxu0 0.0
        %1456 = vmatprep.subr.mxu0 0.0
        %1457 = vmatpush2.msra.mxu0 0.0
        %1458 = vmatprep.subr.mxu0 0.0
        %1459 = vmatpush2.msra.mxu0 0.0
        %1460 = vmatprep.subr.mxu0 0.0
        %1461 = vmatpush2.msra.mxu0 0.0
        %1462 = vmatprep.subr.mxu0 0.0
        %1463 = vmatpush2.msra.mxu0 0.0
        %1464 = vmatprep.subr.mxu0 0.0
        %1465 = vmatpush2.msra.mxu0 0.0
        %1466 = vmatprep.subr.mxu0 0.0
        %1467 = vmatpush2.msra.mxu0 0.0
        %1468 = vmatprep.subr.mxu0 0.0
        %1469 = vmatpush2.msra.mxu0 0.0
        %1470 = vmatprep.subr.mxu0 0.0
        %1471 = vmatpush2.msra.mxu0 0.0
        %1472 = vmatprep.subr.mxu0 0.0
        %1473 = vmatpush2.msra.mxu0 0.0
        %1474 = vmatprep.subr.mxu0 0.0
        %1475 = vmatpush2.msra.mxu0 0.0
        %1476 = vmatprep.subr.mxu0 0.0
        %1477 = vmatpush2.msra.mxu0 0.0
        %1478 = vmatprep.subr.mxu0 0.0
        %1479 = vmatpush2.msra.mxu0 0.0
        %1480 = vmatprep.mubr.f32.mxu0 0.0
        %1481 = vmatmul.mubr.f32.gmra.mxu0 %v1414
        %v1482 = vpop.f32.mrf.mxu0
        %v1483 = vadd.f32 0.0, %v1482
        %v1484 = vpop.f32.mrf.mxu0
        %1485 = vdwg.mxu0
        %v1487 = vsel %vm951, %v1038, 0
        %1489 = vmatprep.subr.mxu0 0.0
        %1490 = vmatpush1.msra.mxu0 0.0
        %1491 = vmatprep.subr.mxu0 0.0
        %1492 = vmatpush1.msra.mxu0 0.0
        %1493 = vmatprep.subr.mxu0 0.0
        %1494 = vmatpush1.msra.mxu0 0.0
        %1495 = vmatprep.subr.mxu0 0.0
        %1496 = vmatpush1.msra.mxu0 0.0
        %1497 = vmatprep.subr.mxu0 0.0
        %1498 = vmatpush1.msra.mxu0 0.0
        %1499 = vmatprep.subr.mxu0 0.0
        %1500 = vmatpush1.msra.mxu0 0.0
        %1501 = vmatprep.subr.mxu0 0.0
        %1502 = vmatpush1.msra.mxu0 0.0
        %1503 = vmatprep.subr.mxu0 0.0
        %1504 = vmatpush1.msra.mxu0 0.0
        %1505 = vmatprep.subr.mxu0 0.0
        %1506 = vmatpush1.msra.mxu0 0.0
        %1507 = vmatprep.subr.mxu0 0.0
        %1508 = vmatpush1.msra.mxu0 0.0
        %1509 = vmatprep.subr.mxu0 0.0
        %1510 = vmatpush1.msra.mxu0 0.0
        %1511 = vmatprep.subr.mxu0 0.0
        %1512 = vmatpush1.msra.mxu0 0.0
        %1513 = vmatprep.subr.mxu0 0.0
        %1514 = vmatpush1.msra.mxu0 0.0
        %1515 = vmatprep.subr.mxu0 0.0
        %1516 = vmatpush1.msra.mxu0 0.0
        %1517 = vmatprep.subr.mxu0 0.0
        %1518 = vmatpush1.msra.mxu0 0.0
        %1519 = vmatprep.subr.mxu0 0.0
        %1520 = vmatpush1.msra.mxu0 %v332
        %1521 = vmatprep.subr.mxu0 0.0
        %1522 = vmatpush2.msra.mxu0 0.0
        %1523 = vmatprep.subr.mxu0 0.0
        %1524 = vmatpush2.msra.mxu0 0.0
        %1525 = vmatprep.subr.mxu0 0.0
        %1526 = vmatpush2.msra.mxu0 0.0
        %1527 = vmatprep.subr.mxu0 0.0
        %1528 = vmatpush2.msra.mxu0 0.0
        %1529 = vmatprep.subr.mxu0 0.0
        %1530 = vmatpush2.msra.mxu0 0.0
        %1531 = vmatprep.subr.mxu0 0.0
        %1532 = vmatpush2.msra.mxu0 0.0
        %1533 = vmatprep.subr.mxu0 0.0
        %1534 = vmatpush2.msra.mxu0 0.0
        %1535 = vmatprep.subr.mxu0 0.0
        %1536 = vmatpush2.msra.mxu0 0.0
        %1537 = vmatprep.subr.mxu0 0.0
        %1538 = vmatpush2.msra.mxu0 0.0
        %1539 = vmatprep.subr.mxu0 0.0
        %1540 = vmatpush2.msra.mxu0 0.0
        %1541 = vmatprep.subr.mxu0 0.0
        %1542 = vmatpush2.msra.mxu0 0.0
        %1543 = vmatprep.subr.mxu0 0.0
        %1544 = vmatpush2.msra.mxu0 0.0
        %1545 = vmatprep.subr.mxu0 0.0
        %1546 = vmatpush2.msra.mxu0 0.0
        %1547 = vmatprep.subr.mxu0 0.0
        %1548 = vmatpush2.msra.mxu0 0.0
        %1549 = vmatprep.subr.mxu0 0.0
        %1550 = vmatpush2.msra.mxu0 0.0
        %1551 = vmatprep.subr.mxu0 0.0
        %1552 = vmatpush2.msra.mxu0 0.0
        %1553 = vmatprep.mubr.f32.mxu0 0.0
        %1554 = vmatmul.mubr.f32.gmra.mxu0 %v1487
        %v1555 = vpop.f32.mrf.mxu0
        %v1556 = vadd.f32 0.0, %v1555
        %v1557 = vpop.f32.mrf.mxu0
        %1558 = vdwg.mxu0
        %v1560 = vsel %vm951, %v1039, 0
        %1562 = vmatprep.subr.mxu0 0.0
        %1563 = vmatpush1.msra.mxu0 0.0
        %1564 = vmatprep.subr.mxu0 0.0
        %1565 = vmatpush1.msra.mxu0 0.0
        %1566 = vmatprep.subr.mxu0 0.0
        %1567 = vmatpush1.msra.mxu0 0.0
        %1568 = vmatprep.subr.mxu0 0.0
        %1569 = vmatpush1.msra.mxu0 0.0
        %1570 = vmatprep.subr.mxu0 0.0
        %1571 = vmatpush1.msra.mxu0 0.0
        %1572 = vmatprep.subr.mxu0 0.0
        %1573 = vmatpush1.msra.mxu0 0.0
        %1574 = vmatprep.subr.mxu0 0.0
        %1575 = vmatpush1.msra.mxu0 0.0
        %1576 = vmatprep.subr.mxu0 0.0
        %1577 = vmatpush1.msra.mxu0 0.0
        %1578 = vmatprep.subr.mxu0 0.0
        %1579 = vmatpush1.msra.mxu0 0.0
        %1580 = vmatprep.subr.mxu0 0.0
        %1581 = vmatpush1.msra.mxu0 0.0
        %1582 = vmatprep.subr.mxu0 0.0
        %1583 = vmatpush1.msra.mxu0 0.0
        %1584 = vmatprep.subr.mxu0 0.0
        %1585 = vmatpush1.msra.mxu0 0.0
        %1586 = vmatprep.subr.mxu0 0.0
        %1587 = vmatpush1.msra.mxu0 0.0
        %1588 = vmatprep.subr.mxu0 0.0
        %1589 = vmatpush1.msra.mxu0 0.0
        %1590 = vmatprep.subr.mxu0 0.0
        %1591 = vmatpush1.msra.mxu0 0.0
        %1592 = vmatprep.subr.mxu0 0.0
        %1593 = vmatpush1.msra.mxu0 %v333
        %1594 = vmatprep.subr.mxu0 0.0
        %1595 = vmatpush2.msra.mxu0 0.0
        %1596 = vmatprep.subr.mxu0 0.0
        %1597 = vmatpush2.msra.mxu0 0.0
        %1598 = vmatprep.subr.mxu0 0.0
        %1599 = vmatpush2.msra.mxu0 0.0
        %1600 = vmatprep.subr.mxu0 0.0
        %1601 = vmatpush2.msra.mxu0 0.0
        %1602 = vmatprep.subr.mxu0 0.0
        %1603 = vmatpush2.msra.mxu0 0.0
        %1604 = vmatprep.subr.mxu0 0.0
        %1605 = vmatpush2.msra.mxu0 0.0
        %1606 = vmatprep.subr.mxu0 0.0
        %1607 = vmatpush2.msra.mxu0 0.0
        %1608 = vmatprep.subr.mxu0 0.0
        %1609 = vmatpush2.msra.mxu0 0.0
        %1610 = vmatprep.subr.mxu0 0.0
        %1611 = vmatpush2.msra.mxu0 0.0
        %1612 = vmatprep.subr.mxu0 0.0
        %1613 = vmatpush2.msra.mxu0 0.0
        %1614 = vmatprep.subr.mxu0 0.0
        %1615 = vmatpush2.msra.mxu0 0.0
        %1616 = vmatprep.subr.mxu0 0.0
        %1617 = vmatpush2.msra.mxu0 0.0
        %1618 = vmatprep.subr.mxu0 0.0
        %1619 = vmatpush2.msra.mxu0 0.0
        %1620 = vmatprep.subr.mxu0 0.0
        %1621 = vmatpush2.msra.mxu0 0.0
        %1622 = vmatprep.subr.mxu0 0.0
        %1623 = vmatpush2.msra.mxu0 0.0
        %1624 = vmatprep.subr.mxu0 0.0
        %1625 = vmatpush2.msra.mxu0 0.0
        %1626 = vmatprep.mubr.f32.mxu0 0.0
        %1627 = vmatmul.mubr.f32.gmra.mxu0 %v1560
        %v1628 = vpop.f32.mrf.mxu0
        %v1629 = vadd.f32 0.0, %v1628
        %v1630 = vpop.f32.mrf.mxu0
        %1631 = vdwg.mxu0
        %v1632 = vcombine.low %v1118, %v1264
        %v1633 = vcombine.high %v1118, %v1264
        %v1635 = vunpack.c.l.s4 1983009808
        %v1636 = vunpack.c.0.s8 %v1635
        %v1637 = vlaneseq
        %v1638 = vshrl.u32 %v1637, 7
        %v1639 = vsub.s32 %v1636, %v1638
        %v1640 = vrot.slane %v1632, %v1639
        %v1642 = vunpack.c.l.s4 1983009808
        %v1643 = vunpack.c.0.s8 %v1642
        %v1644 = vlaneseq
        %v1645 = vshrl.u32 %v1644, 7
        %v1646 = vsub.s32 %v1643, %v1645
        %v1647 = vrot.slane %v1633, %v1646
        %v1648 = vcombine.low %v1191, %v1337
        %v1649 = vcombine.high %v1191, %v1337
        %v1651 = vunpack.c.l.s4 1983009808
        %v1652 = vunpack.c.0.s8 %v1651
        %v1653 = vlaneseq
        %v1654 = vshrl.u32 %v1653, 7
        %v1655 = vsub.s32 %v1652, %v1654
        %v1656 = vrot.slane %v1648, %v1655
        %v1658 = vunpack.c.l.s4 1983009808
        %v1659 = vunpack.c.0.s8 %v1658
        %v1660 = vlaneseq
        %v1661 = vshrl.u32 %v1660, 7
        %v1662 = vsub.s32 %v1659, %v1661
        %v1663 = vrot.slane %v1649, %v1662
        %v1664 = vcombine.low %v1410, %v1556
        %v1665 = vcombine.high %v1410, %v1556
        %v1667 = vunpack.c.l.s4 1983009808
        %v1668 = vunpack.c.0.s8 %v1667
        %v1669 = vlaneseq
        %v1670 = vshrl.u32 %v1669, 7
        %v1671 = vsub.s32 %v1668, %v1670
        %v1672 = vrot.slane %v1664, %v1671
        %v1674 = vunpack.c.l.s4 1983009808
        %v1675 = vunpack.c.0.s8 %v1674
        %v1676 = vlaneseq
        %v1677 = vshrl.u32 %v1676, 7
        %v1678 = vsub.s32 %v1675, %v1677
        %v1679 = vrot.slane %v1665, %v1678
        %v1680 = vcombine.low %v1483, %v1629
        %v1681 = vcombine.high %v1483, %v1629
        %v1683 = vunpack.c.l.s4 1983009808
        %v1684 = vunpack.c.0.s8 %v1683
        %v1685 = vlaneseq
        %v1686 = vshrl.u32 %v1685, 7
        %v1687 = vsub.s32 %v1684, %v1686
        %v1688 = vrot.slane %v1680, %v1687
        %v1690 = vunpack.c.l.s4 1983009808
        %v1691 = vunpack.c.0.s8 %v1690
        %v1692 = vlaneseq
        %v1693 = vshrl.u32 %v1692, 7
        %v1694 = vsub.s32 %v1691, %v1693
        %v1695 = vrot.slane %v1681, %v1694
        %v1696 = vcombine.low %v1640, %v1656
        %v1697 = vcombine.high %v1640, %v1656
        %v1699 = vunpack.c.l.s4 1934713408
        %v1700 = vunpack.c.0.s8 %v1699
        %v1701 = vlaneseq
        %v1702 = vshrl.u32 %v1701, 7
        %v1703 = vsub.s32 %v1700, %v1702
        %v1704 = vrot.slane %v1696, %v1703
        %v1706 = vunpack.c.l.s4 1934713408
        %v1707 = vunpack.c.0.s8 %v1706
        %v1708 = vlaneseq
        %v1709 = vshrl.u32 %v1708, 7
        %v1710 = vsub.s32 %v1707, %v1709
        %v1711 = vrot.slane %v1697, %v1710
        %v1712 = vcombine.low %v1647, %v1663
        %v1713 = vcombine.high %v1647, %v1663
        %v1715 = vunpack.c.l.s4 1934713408
        %v1716 = vunpack.c.0.s8 %v1715
        %v1717 = vlaneseq
        %v1718 = vshrl.u32 %v1717, 7
        %v1719 = vsub.s32 %v1716, %v1718
        %v1720 = vrot.slane %v1712, %v1719
        %v1722 = vunpack.c.l.s4 1934713408
        %v1723 = vunpack.c.0.s8 %v1722
        %v1724 = vlaneseq
        %v1725 = vshrl.u32 %v1724, 7
        %v1726 = vsub.s32 %v1723, %v1725
        %v1727 = vrot.slane %v1713, %v1726
        %v1728 = vcombine.low %v1672, %v1688
        %v1729 = vcombine.high %v1672, %v1688
        %v1731 = vunpack.c.l.s4 1934713408
        %v1732 = vunpack.c.0.s8 %v1731
        %v1733 = vlaneseq
        %v1734 = vshrl.u32 %v1733, 7
        %v1735 = vsub.s32 %v1732, %v1734
        %v1736 = vrot.slane %v1728, %v1735
        %v1738 = vunpack.c.l.s4 1934713408
        %v1739 = vunpack.c.0.s8 %v1738
        %v1740 = vlaneseq
        %v1741 = vshrl.u32 %v1740, 7
        %v1742 = vsub.s32 %v1739, %v1741
        %v1743 = vrot.slane %v1729, %v1742
        %v1744 = vcombine.low %v1679, %v1695
        %v1745 = vcombine.high %v1679, %v1695
        %v1747 = vunpack.c.l.s4 1934713408
        %v1748 = vunpack.c.0.s8 %v1747
        %v1749 = vlaneseq
        %v1750 = vshrl.u32 %v1749, 7
        %v1751 = vsub.s32 %v1748, %v1750
        %v1752 = vrot.slane %v1744, %v1751
        %v1754 = vunpack.c.l.s4 1934713408
        %v1755 = vunpack.c.0.s8 %v1754
        %v1756 = vlaneseq
        %v1757 = vshrl.u32 %v1756, 7
        %v1758 = vsub.s32 %v1755, %v1757
        %v1759 = vrot.slane %v1745, %v1758
        %v1760 = vcombine.low %v1704, %v1736
        %v1761 = vcombine.high %v1704, %v1736
        %v1762 = vcombine.low %v1711, %v1743
        %v1763 = vcombine.high %v1711, %v1743
        %v1764 = vcombine.low %v1720, %v1752
        %v1765 = vcombine.high %v1720, %v1752
        %v1766 = vcombine.low %v1727, %v1759
        %v1767 = vcombine.high %v1727, %v1759
        %1769 = vrot.lane.b32.xlu0 %v1761, 32
        %v1770 = vpop.permute.xlu0 %1769
        %1773 = vrot.lane.b32.xlu0 %v1762, 64
        %v1774 = vpop.permute.xlu0 %1773
        %1777 = vrot.lane.b32.xlu0 %v1763, 96
        %v1778 = vpop.permute.xlu0 %1777
        %1781 = vrot.lane.b32.xlu0 %v1765, 32
        %v1782 = vpop.permute.xlu0 %1781
        %1785 = vrot.lane.b32.xlu0 %v1766, 64
        %v1786 = vpop.permute.xlu0 %1785
        %1789 = vrot.lane.b32.xlu0 %v1767, 96
        %v1790 = vpop.permute.xlu0 %1789
        %v1792 = vsel %vm342, %v1760, %v1770
        %vm1793 = vcmask 523264
        %v1794 = vsel %vm1793, %v1792, %v1774
        %vm1795 = vcmask 785408
        %v1796 = vsel %vm1795, %v1794, %v1778
        %v1797 = vsel %vm342, %v1764, %v1782
        %v1798 = vsel %vm1793, %v1797, %v1786
        %v1799 = vsel %vm1795, %v1798, %v1790
        %1800 = vst [vmem:[%s293] sm:$0xff] %v1796
        %1801 = vst [vmem:[%s293 + $0x8] sm:$0xff] %v1799
        %s1802 = sand.u32 %s111, 1
        %s1803 = scalar_lea.sflag [#allocation4], %s1802
        %s1804 = sand.u32 %s111, 1
        %s1805 = smul.addr %s1804, 16
        %s1806 = scalar_lea.vmem [#allocation8], %s1805
        %s1807 = smul.u32 8, %s25
        %p1808 = scmp.lt.s32.totalorder %s1807, 15
        %s1809 = scalar_select %p1808, %s1807, 15
        %s1810 = smul.addr %s1809, 8
        %s1811 = scalar_lea.vmem %s4, %s1810
        // Predicated region
        $region45: #{tpu_custom_call.1} parent=31 // pred_check
          %p1812 = pneg %p121
        $region46: #{tpu_custom_call.1} parent=31 // pred_check_branch
          %1814 = sbr.rel (%p1812) target = $region48
        $region47: #{tpu_custom_call.1} parent=31 // pred_region
          %s1816 = ssub.s32 256, 256
          %1817 = vsyncadd %s1803, %s1816
          %s1818 = smul.addr %s25, 2
          %s1819 = smul.addr %s1818, 128
          %s1820 = scalar_lea.hbm %s3, %s1819
          %s1822 = sshll.u32 %s1806, 4
          %s1823 = int_to_ptr.vmem [resolvable:$true] %s1822
          %1825 = dma.vmem_to_hbm [thread:$0]  %s1823, 256, %s1820, %s1803
        $region48: #{tpu_custom_call.1} parent=31 // pred_fallthru
          _
        // Predicated region
        $region49: #{tpu_custom_call.1} parent=31 // pred_check
          %p1826 = pneg %p147
        $region50: #{tpu_custom_call.1} parent=31 // pred_check_branch
          %1828 = sbr.rel (%p1826) target = $region52
        $region51: #{tpu_custom_call.1} parent=31 // pred_region
          %s1829 = smul.u32 8, %s25
        $region52: #{tpu_custom_call.1} parent=31 // pred_fallthru
          _
      $region32: #{tpu_custom_call.1} parent=5 // pred_fallthru
        _
      %p1830 = scmp.le.s32.totalorder 2, %s20
      // Predicated region
      $region53: #{tpu_custom_call.1} parent=5 // pred_check
        %p1831 = pneg %p1830
      $region54: #{tpu_custom_call.1} parent=5 // pred_check_branch
        %1833 = sbr.rel (%p1831) target = $region56
      $region55: #{tpu_custom_call.1} parent=5 // pred_region
        %s1834 = ssub.s32 %s20, 2
        // Predicated region
        $region57: #{tpu_custom_call.1} parent=55 // pred_check
          %p1835 = pneg %p127
        $region58: #{tpu_custom_call.1} parent=55 // pred_check_branch
          %1837 = sbr.rel (%p1835) target = $region60
        $region59: #{tpu_custom_call.1} parent=55 // pred_region
          %s1838 = sand.u32 %s112, 1
          %s1839 = scalar_lea.sflag [#allocation4], %s1838
          %s1840 = sand.u32 %s112, 1
          %s1841 = smul.addr %s1840, 16
          %s1842 = scalar_lea.vmem [#allocation8], %s1841
          %1843 = dma.done %s1839, 256
        $region60: #{tpu_custom_call.1} parent=55 // pred_fallthru
          _
        // Predicated region
        $region61: #{tpu_custom_call.1} parent=55 // pred_check
          %p1844 = pneg %p153
        $region62: #{tpu_custom_call.1} parent=55 // pred_check_branch
          %1846 = sbr.rel (%p1844) target = $region64
        $region63: #{tpu_custom_call.1} parent=55 // pred_region
          %s1847 = smul.u32 8, %s26
          %p1848 = scmp.lt.s32.totalorder %s1847, 15
          %s1849 = scalar_select %p1848, %s1847, 15
          %s1850 = smul.addr %s1849, 8
          %s1851 = scalar_lea.vmem %s4, %s1850
        $region64: #{tpu_custom_call.1} parent=55 // pred_fallthru
          _
      $region56: #{tpu_custom_call.1} parent=5 // pred_fallthru
        _
    $region6: #{tpu_custom_call.1} parent=1 // loop_footer
      %s24 = sadd.s32 1, %s20
    $region7: #{tpu_custom_call.1} parent=1 // loop_footer_branch
      %19 = sbr.rel target = $region3
    $region8: #{tpu_custom_call.1} parent=1 // loop_exit
      _
    %1852 = vsyncpa [#allocation3], 1
    %s1853 = scalar_lea.sflag [#allocation3], 1
    %1854 = vsyncpa %s1853, 1
    %1855 = vsyncpa [#allocation6], 1
    %s1856 = scalar_lea.sflag [#allocation6], 1
    %1857 = vsyncpa %s1856, 1
    %1858 = vsyncpa [#allocation4], 1
    %s1859 = scalar_lea.sflag [#allocation4], 1
    %1860 = vsyncpa %s1859, 1

</llo_original>
